<compile_context>
chip_gen: v7x
topology: tpu7x:2x2x1
jax: 0.10.0
libtpu: 0.0.40
codegen_flags: <defaults>
</compile_context>

<pallas_src>
import jax
import jax.numpy as jnp
from jax.experimental import pallas as pl
from jax.experimental.pallas import tpu as pltpu

# ---- configuration (small, consistent with the module) ----------------------
N, C_IN, H, W = 2, 4, 16, 16          # input x: NCHW
C = 16                                # channel width after stem
ALL_EDGES = 6                         # net.all_edges
N_OPS = 3                             # net.num_ops: [skip, 1x1 conv+relu, zero]
NUM_CLASSES = 10
HW = H * W
M = N * HW                            # flattened feature columns (lane axis)


# ---- fused kernel ------------------------------------------------------------
def darts_fused_kernel(wts_ref, x_ref, w_stem_t_ref, w_ops_t_ref,
                       w_head_t_ref, pool_ref, o_ref):
    """stem -> unrolled mixed-op chain -> global-avg-pool -> classifier.

    Channel-major layout: activations are (C, M) so M sits on the 128-lane axis.
      stem   : (C, C_IN) @ (C_IN, M) -> (C, M), ReLU
      edge e : h = w_skip[e]*h + w_conv[e]*relu(W_e^T @ h)   (zero op -> 0)
      pool   : (C, M) @ (M, N)   -> (C, N)   (ones/HW selection matrix on MXU)
      head   : (K, C) @ (C, N)   -> (K, N)   (transposed back in the wrapper)
    """
    h = jnp.maximum(
        jnp.dot(w_stem_t_ref[...], x_ref[...],
                preferred_element_type=jnp.float32), 0.0)

    # Statically unrolled mixed-op chain; h stays in vregs/VMEM throughout.
    for e in range(ALL_EDGES):
        conv = jnp.maximum(
            jnp.dot(w_ops_t_ref[e], h, preferred_element_type=jnp.float32), 0.0)
        w_skip = wts_ref[e, 0]          # SMEM scalar
        w_conv = wts_ref[e, 1]          # SMEM scalar
        # wts_ref[e, 2] weights the 'zero' op -> contributes exactly 0.
        h = w_skip * h + w_conv * conv

    pooled = jnp.dot(h, pool_ref[...], preferred_element_type=jnp.float32)
    o_ref[...] = jnp.dot(w_head_t_ref[...], pooled,
                         preferred_element_type=jnp.float32)


# ---- wrapper -----------------------------------------------------------------
def darts_controller_forward(x, alpha, w_stem, w_ops, w_head):
    E, K = alpha.shape

    # Controller: softmax over alpha (E*K = 18 elements) — plain JAX; a kernel
    # launch + HBM round-trip for 72 bytes costs far more than the softmax.
    weights = jax.nn.softmax(alpha.astype(jnp.float32), axis=-1)

    # Layout plumbing (glue only): channel-major, lane-dense operands.
    x_cm = jnp.transpose(x, (1, 0, 2, 3)).reshape(C_IN, M)   # (C_IN, M)
    w_stem_t = jnp.transpose(w_stem)                         # (C, C_IN)
    w_ops_t = jnp.transpose(w_ops, (0, 2, 1))                # (E, C, C): W_e^T
    w_head_t = jnp.transpose(w_head)                         # (NUM_CLASSES, C)

    # Global-average-pool selection matrix: pool[m, n] = 1/HW iff column m
    # belongs to sample n (columns are ordered n-major, then h, then w).
    sample_of_col = jnp.arange(M, dtype=jnp.int32) // HW
    pool = (sample_of_col[:, None] == jnp.arange(N, dtype=jnp.int32)[None, :]
            ).astype(jnp.float32) * (1.0 / HW)               # (M, N)

    logits_t = pl.pallas_call(
        darts_fused_kernel,
        out_shape=jax.ShapeDtypeStruct((NUM_CLASSES, N), jnp.float32),
        in_specs=[
            pl.BlockSpec(memory_space=pltpu.MemorySpace.SMEM),      # weights (E, K)
            pl.BlockSpec((C_IN, M), lambda *_: (0, 0)),             # x_cm
            pl.BlockSpec((C, C_IN), lambda *_: (0, 0)),             # stem^T
            pl.BlockSpec((E, C, C), lambda *_: (0, 0, 0)),          # W_e^T stack
            pl.BlockSpec((NUM_CLASSES, C), lambda *_: (0, 0)),      # head^T
            pl.BlockSpec((M, N), lambda *_: (0, 0)),                # pool matrix
        ],
        out_specs=pl.BlockSpec((NUM_CLASSES, N), lambda *_: (0, 0)),
    )(weights, x_cm, w_stem_t, w_ops_t, w_head_t, pool)

    return jnp.transpose(logits_t)                            # (N, NUM_CLASSES)


# ---- plain-JAX reference (for sanity check) -----------------------------------
def reference_forward(x, alpha, w_stem, w_ops, w_head):
    wts = jax.nn.softmax(alpha, axis=-1)
    xf = jnp.transpose(x, (0, 2, 3, 1)).reshape(M, C_IN)
    h = jnp.maximum(xf @ w_stem, 0.0)
    for e in range(ALL_EDGES):
        conv = jnp.maximum(h @ w_ops[e], 0.0)
        h = wts[e, 0] * h + wts[e, 1] * conv + wts[e, 2] * 0.0
    pooled = h.reshape(N, HW, C).mean(axis=1)
    return pooled @ w_head


if __name__ == "__main__":
    key = jax.random.PRNGKey(0)
    k_alpha, k_x, k_stem, k_ops, k_head = jax.random.split(key, 5)

    # alpha = 0.001 * randn(all_edges, n_ops)  (as in __init__)
    alpha = 0.001 * jax.random.normal(k_alpha, (ALL_EDGES, N_OPS), jnp.float32)
    x = jax.random.normal(k_x, (N, C_IN, H, W), jnp.float32)
    w_stem = 0.1 * jax.random.normal(k_stem, (C_IN, C), jnp.float32)
    w_ops = 0.1 * jax.random.normal(k_ops, (ALL_EDGES, C, C), jnp.float32)
    w_head = 0.1 * jax.random.normal(k_head, (C, NUM_CLASSES), jnp.float32)

    fwd = jax.jit(darts_controller_forward)
    logits = fwd(x, alpha, w_stem, w_ops, w_head)
    jax.block_until_ready(logits)

    ref = reference_forward(x, alpha, w_stem, w_ops, w_head)
    assert logits.shape == (N, NUM_CLASSES)
    assert jnp.allclose(logits, ref, rtol=2e-2, atol=2e-2), "mismatch vs reference"

    print("KERNEL_OK")
</pallas_src>

<mosaic_0001>
module attributes {stable_mosaic.version = 11 : i64} {
  func.func @darts_fused_kernel(%arg0: memref<6x3xf32, #tpu.memory_space<smem>>, %arg1: memref<4x512xf32, #tpu.memory_space<vmem>>, %arg2: memref<16x4xf32, #tpu.memory_space<vmem>>, %arg3: memref<6x16x16xf32, #tpu.memory_space<vmem>>, %arg4: memref<10x16xf32, #tpu.memory_space<vmem>>, %arg5: memref<512x2xf32, #tpu.memory_space<vmem>>, %arg6: memref<10x2xf32, #tpu.memory_space<vmem>>) attributes {dimension_semantics = [], scalar_prefetch = 0 : i64, scratch_operands = 0 : i64, tpu.core_type = #tpu.core_type<tc>} {
    %c0 = arith.constant 0 : index
    %c0_0 = arith.constant 0 : index
    %0 = vector.load %arg2[%c0, %c0_0] : memref<16x4xf32, #tpu.memory_space<vmem>>, vector<16x4xf32>
    %c0_1 = arith.constant 0 : index
    %c0_2 = arith.constant 0 : index
    %1 = vector.load %arg1[%c0_1, %c0_2] : memref<4x512xf32, #tpu.memory_space<vmem>>, vector<4x512xf32>
    %cst = arith.constant dense<0.000000e+00> : vector<16x512xf32>
    %2 = tpu.matmul %0, %1, %cst {dimension_numbers = #tpu.dot_dimension_numbers<[1], [0], [0], [1], [0, 0, 1, 1], [], []>} : vector<16x4xf32>, vector<4x512xf32>, vector<16x512xf32> -> vector<16x512xf32>
    %cst_3 = arith.constant 0.000000e+00 : f32
    %3 = vector.broadcast %cst_3 : f32 to vector<16x512xf32>
    %4 = arith.maximumf %2, %3 : vector<16x512xf32>
    %c0_4 = arith.constant 0 : index
    %c0_5 = arith.constant 0 : index
    %c0_6 = arith.constant 0 : index
    %5 = vector.load %arg3[%c0_4, %c0_5, %c0_6] : memref<6x16x16xf32, #tpu.memory_space<vmem>>, vector<1x16x16xf32>
    %6 = vector.shape_cast %5 : vector<1x16x16xf32> to vector<16x16xf32>
    %cst_7 = arith.constant dense<0.000000e+00> : vector<16x512xf32>
    %7 = tpu.matmul %6, %4, %cst_7 {dimension_numbers = #tpu.dot_dimension_numbers<[1], [0], [0], [1], [0, 0, 1, 1], [], []>} : vector<16x16xf32>, vector<16x512xf32>, vector<16x512xf32> -> vector<16x512xf32>
    %cst_8 = arith.constant 0.000000e+00 : f32
    %8 = vector.broadcast %cst_8 : f32 to vector<16x512xf32>
    %9 = arith.maximumf %7, %8 : vector<16x512xf32>
    %c0_9 = arith.constant 0 : index
    %c0_10 = arith.constant 0 : index
    %10 = memref.load %arg0[%c0_9, %c0_10] : memref<6x3xf32, #tpu.memory_space<smem>>
    %c0_11 = arith.constant 0 : index
    %c1 = arith.constant 1 : index
    %11 = memref.load %arg0[%c0_11, %c1] : memref<6x3xf32, #tpu.memory_space<smem>>
    %12 = vector.broadcast %10 : f32 to vector<16x512xf32>
    %13 = arith.mulf %12, %4 : vector<16x512xf32>
    %14 = vector.broadcast %11 : f32 to vector<16x512xf32>
    %15 = arith.mulf %14, %9 : vector<16x512xf32>
    %16 = arith.addf %13, %15 : vector<16x512xf32>
    %c1_12 = arith.constant 1 : index
    %c0_13 = arith.constant 0 : index
    %c0_14 = arith.constant 0 : index
    %17 = vector.load %arg3[%c1_12, %c0_13, %c0_14] : memref<6x16x16xf32, #tpu.memory_space<vmem>>, vector<1x16x16xf32>
    %18 = vector.shape_cast %17 : vector<1x16x16xf32> to vector<16x16xf32>
    %cst_15 = arith.constant dense<0.000000e+00> : vector<16x512xf32>
    %19 = tpu.matmul %18, %16, %cst_15 {dimension_numbers = #tpu.dot_dimension_numbers<[1], [0], [0], [1], [0, 0, 1, 1], [], []>} : vector<16x16xf32>, vector<16x512xf32>, vector<16x512xf32> -> vector<16x512xf32>
    %cst_16 = arith.constant 0.000000e+00 : f32
    %20 = vector.broadcast %cst_16 : f32 to vector<16x512xf32>
    %21 = arith.maximumf %19, %20 : vector<16x512xf32>
    %c1_17 = arith.constant 1 : index
    %c0_18 = arith.constant 0 : index
    %22 = memref.load %arg0[%c1_17, %c0_18] : memref<6x3xf32, #tpu.memory_space<smem>>
    %c1_19 = arith.constant 1 : index
    %c1_20 = arith.constant 1 : index
    %23 = memref.load %arg0[%c1_19, %c1_20] : memref<6x3xf32, #tpu.memory_space<smem>>
    %24 = vector.broadcast %22 : f32 to vector<16x512xf32>
    %25 = arith.mulf %24, %16 : vector<16x512xf32>
    %26 = vector.broadcast %23 : f32 to vector<16x512xf32>
    %27 = arith.mulf %26, %21 : vector<16x512xf32>
    %28 = arith.addf %25, %27 : vector<16x512xf32>
    %c2 = arith.constant 2 : index
    %c0_21 = arith.constant 0 : index
    %c0_22 = arith.constant 0 : index
    %29 = vector.load %arg3[%c2, %c0_21, %c0_22] : memref<6x16x16xf32, #tpu.memory_space<vmem>>, vector<1x16x16xf32>
    %30 = vector.shape_cast %29 : vector<1x16x16xf32> to vector<16x16xf32>
    %cst_23 = arith.constant dense<0.000000e+00> : vector<16x512xf32>
    %31 = tpu.matmul %30, %28, %cst_23 {dimension_numbers = #tpu.dot_dimension_numbers<[1], [0], [0], [1], [0, 0, 1, 1], [], []>} : vector<16x16xf32>, vector<16x512xf32>, vector<16x512xf32> -> vector<16x512xf32>
    %cst_24 = arith.constant 0.000000e+00 : f32
    %32 = vector.broadcast %cst_24 : f32 to vector<16x512xf32>
    %33 = arith.maximumf %31, %32 : vector<16x512xf32>
    %c2_25 = arith.constant 2 : index
    %c0_26 = arith.constant 0 : index
    %34 = memref.load %arg0[%c2_25, %c0_26] : memref<6x3xf32, #tpu.memory_space<smem>>
    %c2_27 = arith.constant 2 : index
    %c1_28 = arith.constant 1 : index
    %35 = memref.load %arg0[%c2_27, %c1_28] : memref<6x3xf32, #tpu.memory_space<smem>>
    %36 = vector.broadcast %34 : f32 to vector<16x512xf32>
    %37 = arith.mulf %36, %28 : vector<16x512xf32>
    %38 = vector.broadcast %35 : f32 to vector<16x512xf32>
    %39 = arith.mulf %38, %33 : vector<16x512xf32>
    %40 = arith.addf %37, %39 : vector<16x512xf32>
    %c3 = arith.constant 3 : index
    %c0_29 = arith.constant 0 : index
    %c0_30 = arith.constant 0 : index
    %41 = vector.load %arg3[%c3, %c0_29, %c0_30] : memref<6x16x16xf32, #tpu.memory_space<vmem>>, vector<1x16x16xf32>
    %42 = vector.shape_cast %41 : vector<1x16x16xf32> to vector<16x16xf32>
    %cst_31 = arith.constant dense<0.000000e+00> : vector<16x512xf32>
    %43 = tpu.matmul %42, %40, %cst_31 {dimension_numbers = #tpu.dot_dimension_numbers<[1], [0], [0], [1], [0, 0, 1, 1], [], []>} : vector<16x16xf32>, vector<16x512xf32>, vector<16x512xf32> -> vector<16x512xf32>
    %cst_32 = arith.constant 0.000000e+00 : f32
    %44 = vector.broadcast %cst_32 : f32 to vector<16x512xf32>
    %45 = arith.maximumf %43, %44 : vector<16x512xf32>
    %c3_33 = arith.constant 3 : index
    %c0_34 = arith.constant 0 : index
    %46 = memref.load %arg0[%c3_33, %c0_34] : memref<6x3xf32, #tpu.memory_space<smem>>
    %c3_35 = arith.constant 3 : index
    %c1_36 = arith.constant 1 : index
    %47 = memref.load %arg0[%c3_35, %c1_36] : memref<6x3xf32, #tpu.memory_space<smem>>
    %48 = vector.broadcast %46 : f32 to vector<16x512xf32>
    %49 = arith.mulf %48, %40 : vector<16x512xf32>
    %50 = vector.broadcast %47 : f32 to vector<16x512xf32>
    %51 = arith.mulf %50, %45 : vector<16x512xf32>
    %52 = arith.addf %49, %51 : vector<16x512xf32>
    %c4 = arith.constant 4 : index
    %c0_37 = arith.constant 0 : index
    %c0_38 = arith.constant 0 : index
    %53 = vector.load %arg3[%c4, %c0_37, %c0_38] : memref<6x16x16xf32, #tpu.memory_space<vmem>>, vector<1x16x16xf32>
    %54 = vector.shape_cast %53 : vector<1x16x16xf32> to vector<16x16xf32>
    %cst_39 = arith.constant dense<0.000000e+00> : vector<16x512xf32>
    %55 = tpu.matmul %54, %52, %cst_39 {dimension_numbers = #tpu.dot_dimension_numbers<[1], [0], [0], [1], [0, 0, 1, 1], [], []>} : vector<16x16xf32>, vector<16x512xf32>, vector<16x512xf32> -> vector<16x512xf32>
    %cst_40 = arith.constant 0.000000e+00 : f32
    %56 = vector.broadcast %cst_40 : f32 to vector<16x512xf32>
    %57 = arith.maximumf %55, %56 : vector<16x512xf32>
    %c4_41 = arith.constant 4 : index
    %c0_42 = arith.constant 0 : index
    %58 = memref.load %arg0[%c4_41, %c0_42] : memref<6x3xf32, #tpu.memory_space<smem>>
    %c4_43 = arith.constant 4 : index
    %c1_44 = arith.constant 1 : index
    %59 = memref.load %arg0[%c4_43, %c1_44] : memref<6x3xf32, #tpu.memory_space<smem>>
    %60 = vector.broadcast %58 : f32 to vector<16x512xf32>
    %61 = arith.mulf %60, %52 : vector<16x512xf32>
    %62 = vector.broadcast %59 : f32 to vector<16x512xf32>
    %63 = arith.mulf %62, %57 : vector<16x512xf32>
    %64 = arith.addf %61, %63 : vector<16x512xf32>
    %c5 = arith.constant 5 : index
    %c0_45 = arith.constant 0 : index
    %c0_46 = arith.constant 0 : index
    %65 = vector.load %arg3[%c5, %c0_45, %c0_46] : memref<6x16x16xf32, #tpu.memory_space<vmem>>, vector<1x16x16xf32>
    %66 = vector.shape_cast %65 : vector<1x16x16xf32> to vector<16x16xf32>
    %cst_47 = arith.constant dense<0.000000e+00> : vector<16x512xf32>
    %67 = tpu.matmul %66, %64, %cst_47 {dimension_numbers = #tpu.dot_dimension_numbers<[1], [0], [0], [1], [0, 0, 1, 1], [], []>} : vector<16x16xf32>, vector<16x512xf32>, vector<16x512xf32> -> vector<16x512xf32>
    %cst_48 = arith.constant 0.000000e+00 : f32
    %68 = vector.broadcast %cst_48 : f32 to vector<16x512xf32>
    %69 = arith.maximumf %67, %68 : vector<16x512xf32>
    %c5_49 = arith.constant 5 : index
    %c0_50 = arith.constant 0 : index
    %70 = memref.load %arg0[%c5_49, %c0_50] : memref<6x3xf32, #tpu.memory_space<smem>>
    %c5_51 = arith.constant 5 : index
    %c1_52 = arith.constant 1 : index
    %71 = memref.load %arg0[%c5_51, %c1_52] : memref<6x3xf32, #tpu.memory_space<smem>>
    %72 = vector.broadcast %70 : f32 to vector<16x512xf32>
    %73 = arith.mulf %72, %64 : vector<16x512xf32>
    %74 = vector.broadcast %71 : f32 to vector<16x512xf32>
    %75 = arith.mulf %74, %69 : vector<16x512xf32>
    %76 = arith.addf %73, %75 : vector<16x512xf32>
    %c0_53 = arith.constant 0 : index
    %c0_54 = arith.constant 0 : index
    %77 = vector.load %arg5[%c0_53, %c0_54] : memref<512x2xf32, #tpu.memory_space<vmem>>, vector<512x2xf32>
    %cst_55 = arith.constant dense<0.000000e+00> : vector<16x2xf32>
    %78 = tpu.matmul %76, %77, %cst_55 {dimension_numbers = #tpu.dot_dimension_numbers<[1], [0], [0], [1], [0, 0, 1, 1], [], []>} : vector<16x512xf32>, vector<512x2xf32>, vector<16x2xf32> -> vector<16x2xf32>
    %c0_56 = arith.constant 0 : index
    %c0_57 = arith.constant 0 : index
    %79 = vector.load %arg4[%c0_56, %c0_57] : memref<10x16xf32, #tpu.memory_space<vmem>>, vector<10x16xf32>
    %cst_58 = arith.constant dense<0.000000e+00> : vector<10x2xf32>
    %80 = tpu.matmul %79, %78, %cst_58 {dimension_numbers = #tpu.dot_dimension_numbers<[1], [0], [0], [1], [0, 0, 1, 1], [], []>} : vector<10x16xf32>, vector<16x2xf32>, vector<10x2xf32> -> vector<10x2xf32>
    %c0_59 = arith.constant 0 : index
    %c0_60 = arith.constant 0 : index
    %81 = vector.load %arg6[%c0_59, %c0_60] : memref<10x2xf32, #tpu.memory_space<vmem>>, vector<10x2xf32>
    tpu.vector_store %arg6[%c0_59, %c0_60], %80 {strides = array<i32>} : memref<10x2xf32, #tpu.memory_space<vmem>>, vector<10x2xf32>,
    return
  }
}

</mosaic_0001>

<llo_original>
// kernel: darts_controller_forward.1
$region0: #{darts_controller_forward.1}
  #allocation0 [shape = 'u32[]', space=smem, size = 0x4, offset = 0x4, fixed_abs, tag = 'smem constant byte address 0x4 - core index']
  #allocation1 [shape = 'u32[144,128]{1,0:T(1,128)}', space=vmem, size = 0x12000, scoped, tag = 'internal scratch']
  %s0 = inlined_call_operand.vmem [shape: f32[6,3], index: 0, kind: input, shape index: {}]
  %s1 = inlined_call_operand.vmem [shape: f32[4,512], index: 1, kind: input, shape index: {}]
  %s2 = inlined_call_operand.vmem [shape: f32[16,4], index: 2, kind: input, shape index: {}]
  %s3 = inlined_call_operand.vmem [shape: f32[6,16,16], index: 3, kind: input, shape index: {}]
  %s4 = inlined_call_operand.vmem [shape: f32[10,16], index: 4, kind: input, shape index: {}]
  %s5 = inlined_call_operand.vmem [shape: f32[512,2], index: 5, kind: input, shape index: {}]
  %s6 = inlined_call_operand.vmem [shape: f32[10,2], index: 6, kind: output, shape index: {}]
  %s7 = sld [smem:[#allocation0]]
  $region38: #{darts_controller_forward.1} parent=0
    _
  %s9 = ssub.s32 1, %s7
  %s10 = scalar_select 0, %s9, %s7
  $region1: #{darts_controller_forward.1} parent=0
    #allocation2 [shape = 'u8[4096]{0}', space=smem, size = 0x1000, scoped, tag = 'input window, operand 0, single buffered']
    #allocation3 [shape = 's32[1]{0}', space=sflag, size = 0x4, scoped, tag = 'scoped memory for darts_controller_forward.1']
    %11 = vsyncpa [#allocation3], 0
    // Predicated region
    $region2: #{darts_controller_forward.1} parent=1 // pred_check
      _
    $region3: #{darts_controller_forward.1} parent=1 // pred_check_branch
      %13 = sbr.rel (0) target = $region5
    $region4: #{darts_controller_forward.1} parent=1 // pred_region
      %s15 = ssub.s32 128, 128
      %16 = vsyncadd [#allocation3], %s15
      %s18 = sshll.u32 %s0, 4
      %s19 = int_to_ptr.vmem [resolvable:$true] %s18
      %21 = dma.vmem_to_smem %s19, 128, [#allocation2], [#allocation3]
    $region5: #{darts_controller_forward.1} parent=1 // pred_fallthru
      _
    // Predicated region
    $region6: #{darts_controller_forward.1} parent=1 // pred_check
      _
    $region7: #{darts_controller_forward.1} parent=1 // pred_check_branch
      %23 = sbr.rel (0) target = $region9
    $region8: #{darts_controller_forward.1} parent=1 // pred_region
      _
    $region9: #{darts_controller_forward.1} parent=1 // pred_fallthru
      _
    // Predicated region
    $region10: #{darts_controller_forward.1} parent=1 // pred_check
      _
    $region11: #{darts_controller_forward.1} parent=1 // pred_check_branch
      %25 = sbr.rel (0) target = $region13
    $region12: #{darts_controller_forward.1} parent=1 // pred_region
      _
    $region13: #{darts_controller_forward.1} parent=1 // pred_fallthru
      _
    // Predicated region
    $region14: #{darts_controller_forward.1} parent=1 // pred_check
      _
    $region15: #{darts_controller_forward.1} parent=1 // pred_check_branch
      %27 = sbr.rel (0) target = $region17
    $region16: #{darts_controller_forward.1} parent=1 // pred_region
      _
    $region17: #{darts_controller_forward.1} parent=1 // pred_fallthru
      _
    // Predicated region
    $region18: #{darts_controller_forward.1} parent=1 // pred_check
      _
    $region19: #{darts_controller_forward.1} parent=1 // pred_check_branch
      %29 = sbr.rel (0) target = $region21
    $region20: #{darts_controller_forward.1} parent=1 // pred_region
      _
    $region21: #{darts_controller_forward.1} parent=1 // pred_fallthru
      _
    // Predicated region
    $region22: #{darts_controller_forward.1} parent=1 // pred_check
      _
    $region23: #{darts_controller_forward.1} parent=1 // pred_check_branch
      %31 = sbr.rel (0) target = $region25
    $region24: #{darts_controller_forward.1} parent=1 // pred_region
      _
    $region25: #{darts_controller_forward.1} parent=1 // pred_fallthru
      _
    // Predicated region
    $region26: #{darts_controller_forward.1} parent=1 // pred_check
      _
    $region27: #{darts_controller_forward.1} parent=1 // pred_check_branch
      %33 = sbr.rel (0) target = $region29
    $region28: #{darts_controller_forward.1} parent=1 // pred_region
      %34 = dma.done [#allocation3], 128
    $region29: #{darts_controller_forward.1} parent=1 // pred_fallthru
      _
    %35 = sfence
    %v36 = vld [vmem:[%s2] sm:$0xff]
    %v37 = vld [vmem:[%s2 + $0x8] sm:$0xff]
    %v38 = vld [vmem:[%s1] sm:$0xff]
    %v39 = vld [vmem:[%s1 + $0x8] sm:$0xff]
    %v42 = vcombine.high %v38, %v38
    %v43 = vcombine.high %v39, %v39
    %vm44 = vcmask 31744
    %v46 = vsel %vm44, %v36, 0
    %v49 = vsel %vm44, %v37, 0
    %vm51 = vcmask 1043456
    %v52 = vsel %vm51, %v38, 0
    %v54 = vsel %vm51, %v42, 0
    %v56 = vsel %vm51, %v39, 0
    %v58 = vsel %vm51, %v43, 0
    %60 = vmatprep.subr.mxu0 %v54
    %61 = vmatpush1.msra.mxu0 %v52
    %62 = vmatprep.subr.mxu0 0.0
    %63 = vmatpush1.msra.mxu0 0.0
    %64 = vmatprep.subr.mxu0 0.0
    %65 = vmatpush1.msra.mxu0 0.0
    %66 = vmatprep.subr.mxu0 0.0
    %67 = vmatpush1.msra.mxu0 0.0
    %68 = vmatprep.subr.mxu0 0.0
    %69 = vmatpush1.msra.mxu0 0.0
    %70 = vmatprep.subr.mxu0 0.0
    %71 = vmatpush1.msra.mxu0 0.0
    %72 = vmatprep.subr.mxu0 0.0
    %73 = vmatpush1.msra.mxu0 0.0
    %74 = vmatprep.subr.mxu0 0.0
    %75 = vmatpush1.msra.mxu0 0.0
    %76 = vmatprep.subr.mxu0 0.0
    %77 = vmatpush1.msra.mxu0 0.0
    %78 = vmatprep.subr.mxu0 0.0
    %79 = vmatpush1.msra.mxu0 0.0
    %80 = vmatprep.subr.mxu0 0.0
    %81 = vmatpush1.msra.mxu0 0.0
    %82 = vmatprep.subr.mxu0 0.0
    %83 = vmatpush1.msra.mxu0 0.0
    %84 = vmatprep.subr.mxu0 0.0
    %85 = vmatpush1.msra.mxu0 0.0
    %86 = vmatprep.subr.mxu0 0.0
    %87 = vmatpush1.msra.mxu0 0.0
    %88 = vmatprep.subr.mxu0 0.0
    %89 = vmatpush1.msra.mxu0 0.0
    %90 = vmatprep.subr.mxu0 0.0
    %91 = vmatpush1.msra.mxu0 0.0
    %92 = vmatprep.subr.mxu0 0.0
    %93 = vmatpush1.msra.mxu0 0.0
    %94 = vmatprep.subr.mxu0 0.0
    %95 = vmatpush1.msra.mxu0 0.0
    %96 = vmatprep.subr.mxu0 0.0
    %97 = vmatpush1.msra.mxu0 0.0
    %98 = vmatprep.subr.mxu0 0.0
    %99 = vmatpush1.msra.mxu0 0.0
    %100 = vmatprep.subr.mxu0 0.0
    %101 = vmatpush1.msra.mxu0 0.0
    %102 = vmatprep.subr.mxu0 0.0
    %103 = vmatpush1.msra.mxu0 0.0
    %104 = vmatprep.subr.mxu0 0.0
    %105 = vmatpush1.msra.mxu0 0.0
    %106 = vmatprep.subr.mxu0 0.0
    %107 = vmatpush1.msra.mxu0 0.0
    %108 = vmatprep.subr.mxu0 0.0
    %109 = vmatpush1.msra.mxu0 0.0
    %110 = vmatprep.subr.mxu0 0.0
    %111 = vmatpush1.msra.mxu0 0.0
    %112 = vmatprep.subr.mxu0 0.0
    %113 = vmatpush1.msra.mxu0 0.0
    %114 = vmatprep.subr.mxu0 0.0
    %115 = vmatpush1.msra.mxu0 0.0
    %116 = vmatprep.subr.mxu0 0.0
    %117 = vmatpush1.msra.mxu0 0.0
    %118 = vmatprep.subr.mxu0 0.0
    %119 = vmatpush1.msra.mxu0 0.0
    %120 = vmatprep.subr.mxu0 0.0
    %121 = vmatpush1.msra.mxu0 0.0
    %122 = vmatprep.subr.mxu0 0.0
    %123 = vmatpush1.msra.mxu0 0.0
    %124 = vmatprep.mubr.f32.mxu0 0.0
    %125 = vmatmul.mubr.f32.gmra.mrb[0].mxu0 %v46
    %v126 = vpop.f32.mrb[0].mxu0
    %v127 = vadd.f32 0.0, %v126
    %v128 = vpop.f32.mrb[0].mxu0
    %v129 = vadd.f32 0.0, %v128
    %130 = vmatprep.mubr.f32.mxu0 0.0
    %131 = vmatmul.mubr.f32.gmra.mrb[0].mxu0 %v49
    %v132 = vpop.f32.mrb[0].mxu0
    %v133 = vadd.f32 0.0, %v132
    %v134 = vpop.f32.mrb[0].mxu0
    %v135 = vadd.f32 0.0, %v134
    %136 = vdwg.mxu0
    %137 = vmatprep.subr.mxu0 %v58
    %138 = vmatpush1.msra.mxu0 %v56
    %139 = vmatprep.subr.mxu0 0.0
    %140 = vmatpush1.msra.mxu0 0.0
    %141 = vmatprep.subr.mxu0 0.0
    %142 = vmatpush1.msra.mxu0 0.0
    %143 = vmatprep.subr.mxu0 0.0
    %144 = vmatpush1.msra.mxu0 0.0
    %145 = vmatprep.subr.mxu0 0.0
    %146 = vmatpush1.msra.mxu0 0.0
    %147 = vmatprep.subr.mxu0 0.0
    %148 = vmatpush1.msra.mxu0 0.0
    %149 = vmatprep.subr.mxu0 0.0
    %150 = vmatpush1.msra.mxu0 0.0
    %151 = vmatprep.subr.mxu0 0.0
    %152 = vmatpush1.msra.mxu0 0.0
    %153 = vmatprep.subr.mxu0 0.0
    %154 = vmatpush1.msra.mxu0 0.0
    %155 = vmatprep.subr.mxu0 0.0
    %156 = vmatpush1.msra.mxu0 0.0
    %157 = vmatprep.subr.mxu0 0.0
    %158 = vmatpush1.msra.mxu0 0.0
    %159 = vmatprep.subr.mxu0 0.0
    %160 = vmatpush1.msra.mxu0 0.0
    %161 = vmatprep.subr.mxu0 0.0
    %162 = vmatpush1.msra.mxu0 0.0
    %163 = vmatprep.subr.mxu0 0.0
    %164 = vmatpush1.msra.mxu0 0.0
    %165 = vmatprep.subr.mxu0 0.0
    %166 = vmatpush1.msra.mxu0 0.0
    %167 = vmatprep.subr.mxu0 0.0
    %168 = vmatpush1.msra.mxu0 0.0
    %169 = vmatprep.subr.mxu0 0.0
    %170 = vmatpush1.msra.mxu0 0.0
    %171 = vmatprep.subr.mxu0 0.0
    %172 = vmatpush1.msra.mxu0 0.0
    %173 = vmatprep.subr.mxu0 0.0
    %174 = vmatpush1.msra.mxu0 0.0
    %175 = vmatprep.subr.mxu0 0.0
    %176 = vmatpush1.msra.mxu0 0.0
    %177 = vmatprep.subr.mxu0 0.0
    %178 = vmatpush1.msra.mxu0 0.0
    %179 = vmatprep.subr.mxu0 0.0
    %180 = vmatpush1.msra.mxu0 0.0
    %181 = vmatprep.subr.mxu0 0.0
    %182 = vmatpush1.msra.mxu0 0.0
    %183 = vmatprep.subr.mxu0 0.0
    %184 = vmatpush1.msra.mxu0 0.0
    %185 = vmatprep.subr.mxu0 0.0
    %186 = vmatpush1.msra.mxu0 0.0
    %187 = vmatprep.subr.mxu0 0.0
    %188 = vmatpush1.msra.mxu0 0.0
    %189 = vmatprep.subr.mxu0 0.0
    %190 = vmatpush1.msra.mxu0 0.0
    %191 = vmatprep.subr.mxu0 0.0
    %192 = vmatpush1.msra.mxu0 0.0
    %193 = vmatprep.subr.mxu0 0.0
    %194 = vmatpush1.msra.mxu0 0.0
    %195 = vmatprep.subr.mxu0 0.0
    %196 = vmatpush1.msra.mxu0 0.0
    %197 = vmatprep.subr.mxu0 0.0
    %198 = vmatpush1.msra.mxu0 0.0
    %199 = vmatprep.subr.mxu0 0.0
    %200 = vmatpush1.msra.mxu0 0.0
    %201 = vmatprep.mubr.f32.mxu0 0.0
    %202 = vmatmul.mubr.f32.gmra.mrb[0].mxu0 %v46
    %v203 = vpop.f32.mrb[0].mxu0
    %v204 = vadd.f32 0.0, %v203
    %v205 = vpop.f32.mrb[0].mxu0
    %v206 = vadd.f32 0.0, %v205
    %207 = vmatprep.mubr.f32.mxu0 0.0
    %208 = vmatmul.mubr.f32.gmra.mrb[0].mxu0 %v49
    %v209 = vpop.f32.mrb[0].mxu0
    %v210 = vadd.f32 0.0, %v209
    %v211 = vpop.f32.mrb[0].mxu0
    %v212 = vadd.f32 0.0, %v211
    %213 = vdwg.mxu0
    %v214 = vmax.f32 %v127, 0.0
    %v215 = vmax.f32 %v129, 0.0
    %v216 = vmax.f32 %v204, 0.0
    %v217 = vmax.f32 %v206, 0.0
    %v218 = vmax.f32 %v133, 0.0
    %v219 = vmax.f32 %v135, 0.0
    %v220 = vmax.f32 %v210, 0.0
    %v221 = vmax.f32 %v212, 0.0
    %v222 = vld [vmem:[%s3] sm:$0xff]
    %v223 = vld [vmem:[%s3 + $0x8] sm:$0xff]
    %vm224 = vcmask 130048
    %v226 = vsel %vm224, %v222, 0
    %v229 = vsel %vm224, %v223, 0
    %231 = vmatprep.subr.mxu0 %v215
    %232 = vmatpush1.msra.mxu0 %v214
    %233 = vmatprep.subr.mxu0 %v219
    %234 = vmatpush1.msra.mxu0 %v218
    %235 = vmatprep.subr.mxu0 0.0
    %236 = vmatpush1.msra.mxu0 0.0
    %237 = vmatprep.subr.mxu0 0.0
    %238 = vmatpush1.msra.mxu0 0.0
    %239 = vmatprep.subr.mxu0 0.0
    %240 = vmatpush1.msra.mxu0 0.0
    %241 = vmatprep.subr.mxu0 0.0
    %242 = vmatpush1.msra.mxu0 0.0
    %243 = vmatprep.subr.mxu0 0.0
    %244 = vmatpush1.msra.mxu0 0.0
    %245 = vmatprep.subr.mxu0 0.0
    %246 = vmatpush1.msra.mxu0 0.0
    %247 = vmatprep.subr.mxu0 0.0
    %248 = vmatpush1.msra.mxu0 0.0
    %249 = vmatprep.subr.mxu0 0.0
    %250 = vmatpush1.msra.mxu0 0.0
    %251 = vmatprep.subr.mxu0 0.0
    %252 = vmatpush1.msra.mxu0 0.0
    %253 = vmatprep.subr.mxu0 0.0
    %254 = vmatpush1.msra.mxu0 0.0
    %255 = vmatprep.subr.mxu0 0.0
    %256 = vmatpush1.msra.mxu0 0.0
    %257 = vmatprep.subr.mxu0 0.0
    %258 = vmatpush1.msra.mxu0 0.0
    %259 = vmatprep.subr.mxu0 0.0
    %260 = vmatpush1.msra.mxu0 0.0
    %261 = vmatprep.subr.mxu0 0.0
    %262 = vmatpush1.msra.mxu0 0.0
    %263 = vmatprep.subr.mxu0 0.0
    %264 = vmatpush1.msra.mxu0 0.0
    %265 = vmatprep.subr.mxu0 0.0
    %266 = vmatpush1.msra.mxu0 0.0
    %267 = vmatprep.subr.mxu0 0.0
    %268 = vmatpush1.msra.mxu0 0.0
    %269 = vmatprep.subr.mxu0 0.0
    %270 = vmatpush1.msra.mxu0 0.0
    %271 = vmatprep.subr.mxu0 0.0
    %272 = vmatpush1.msra.mxu0 0.0
    %273 = vmatprep.subr.mxu0 0.0
    %274 = vmatpush1.msra.mxu0 0.0
    %275 = vmatprep.subr.mxu0 0.0
    %276 = vmatpush1.msra.mxu0 0.0
    %277 = vmatprep.subr.mxu0 0.0
    %278 = vmatpush1.msra.mxu0 0.0
    %279 = vmatprep.subr.mxu0 0.0
    %280 = vmatpush1.msra.mxu0 0.0
    %281 = vmatprep.subr.mxu0 0.0
    %282 = vmatpush1.msra.mxu0 0.0
    %283 = vmatprep.subr.mxu0 0.0
    %284 = vmatpush1.msra.mxu0 0.0
    %285 = vmatprep.subr.mxu0 0.0
    %286 = vmatpush1.msra.mxu0 0.0
    %287 = vmatprep.subr.mxu0 0.0
    %288 = vmatpush1.msra.mxu0 0.0
    %289 = vmatprep.subr.mxu0 0.0
    %290 = vmatpush1.msra.mxu0 0.0
    %291 = vmatprep.subr.mxu0 0.0
    %292 = vmatpush1.msra.mxu0 0.0
    %293 = vmatprep.subr.mxu0 0.0
    %294 = vmatpush1.msra.mxu0 0.0
    %295 = vmatprep.mubr.f32.mxu0 0.0
    %296 = vmatmul.mubr.f32.gmra.mrb[0].mxu0 %v226
    %v297 = vpop.f32.mrb[0].mxu0
    %v298 = vadd.f32 0.0, %v297
    %v299 = vpop.f32.mrb[0].mxu0
    %v300 = vadd.f32 0.0, %v299
    %301 = vmatprep.mubr.f32.mxu0 0.0
    %302 = vmatmul.mubr.f32.gmra.mrb[0].mxu0 %v229
    %v303 = vpop.f32.mrb[0].mxu0
    %v304 = vadd.f32 0.0, %v303
    %v305 = vpop.f32.mrb[0].mxu0
    %v306 = vadd.f32 0.0, %v305
    %307 = vdwg.mxu0
    %308 = vmatprep.subr.mxu0 %v217
    %309 = vmatpush1.msra.mxu0 %v216
    %310 = vmatprep.subr.mxu0 %v221
    %311 = vmatpush1.msra.mxu0 %v220
    %312 = vmatprep.subr.mxu0 0.0
    %313 = vmatpush1.msra.mxu0 0.0
    %314 = vmatprep.subr.mxu0 0.0
    %315 = vmatpush1.msra.mxu0 0.0
    %316 = vmatprep.subr.mxu0 0.0
    %317 = vmatpush1.msra.mxu0 0.0
    %318 = vmatprep.subr.mxu0 0.0
    %319 = vmatpush1.msra.mxu0 0.0
    %320 = vmatprep.subr.mxu0 0.0
    %321 = vmatpush1.msra.mxu0 0.0
    %322 = vmatprep.subr.mxu0 0.0
    %323 = vmatpush1.msra.mxu0 0.0
    %324 = vmatprep.subr.mxu0 0.0
    %325 = vmatpush1.msra.mxu0 0.0
    %326 = vmatprep.subr.mxu0 0.0
    %327 = vmatpush1.msra.mxu0 0.0
    %328 = vmatprep.subr.mxu0 0.0
    %329 = vmatpush1.msra.mxu0 0.0
    %330 = vmatprep.subr.mxu0 0.0
    %331 = vmatpush1.msra.mxu0 0.0
    %332 = vmatprep.subr.mxu0 0.0
    %333 = vmatpush1.msra.mxu0 0.0
    %334 = vmatprep.subr.mxu0 0.0
    %335 = vmatpush1.msra.mxu0 0.0
    %336 = vmatprep.subr.mxu0 0.0
    %337 = vmatpush1.msra.mxu0 0.0
    %338 = vmatprep.subr.mxu0 0.0
    %339 = vmatpush1.msra.mxu0 0.0
    %340 = vmatprep.subr.mxu0 0.0
    %341 = vmatpush1.msra.mxu0 0.0
    %342 = vmatprep.subr.mxu0 0.0
    %343 = vmatpush1.msra.mxu0 0.0
    %344 = vmatprep.subr.mxu0 0.0
    %345 = vmatpush1.msra.mxu0 0.0
    %346 = vmatprep.subr.mxu0 0.0
    %347 = vmatpush1.msra.mxu0 0.0
    %348 = vmatprep.subr.mxu0 0.0
    %349 = vmatpush1.msra.mxu0 0.0
    %350 = vmatprep.subr.mxu0 0.0
    %351 = vmatpush1.msra.mxu0 0.0
    %352 = vmatprep.subr.mxu0 0.0
    %353 = vmatpush1.msra.mxu0 0.0
    %354 = vmatprep.subr.mxu0 0.0
    %355 = vmatpush1.msra.mxu0 0.0
    %356 = vmatprep.subr.mxu0 0.0
    %357 = vmatpush1.msra.mxu0 0.0
    %358 = vmatprep.subr.mxu0 0.0
    %359 = vmatpush1.msra.mxu0 0.0
    %360 = vmatprep.subr.mxu0 0.0
    %361 = vmatpush1.msra.mxu0 0.0
    %362 = vmatprep.subr.mxu0 0.0
    %363 = vmatpush1.msra.mxu0 0.0
    %364 = vmatprep.subr.mxu0 0.0
    %365 = vmatpush1.msra.mxu0 0.0
    %366 = vmatprep.subr.mxu0 0.0
    %367 = vmatpush1.msra.mxu0 0.0
    %368 = vmatprep.subr.mxu0 0.0
    %369 = vmatpush1.msra.mxu0 0.0
    %370 = vmatprep.subr.mxu0 0.0
    %371 = vmatpush1.msra.mxu0 0.0
    %372 = vmatprep.mubr.f32.mxu0 0.0
    %373 = vmatmul.mubr.f32.gmra.mrb[0].mxu0 %v226
    %v374 = vpop.f32.mrb[0].mxu0
    %v375 = vadd.f32 0.0, %v374
    %v376 = vpop.f32.mrb[0].mxu0
    %v377 = vadd.f32 0.0, %v376
    %378 = vmatprep.mubr.f32.mxu0 0.0
    %379 = vmatmul.mubr.f32.gmra.mrb[0].mxu0 %v229
    %v380 = vpop.f32.mrb[0].mxu0
    %v381 = vadd.f32 0.0, %v380
    %v382 = vpop.f32.mrb[0].mxu0
    %v383 = vadd.f32 0.0, %v382
    %384 = vdwg.mxu0
    %v385 = vmax.f32 %v298, 0.0
    %v386 = vmax.f32 %v300, 0.0
    %v387 = vmax.f32 %v375, 0.0
    %v388 = vmax.f32 %v377, 0.0
    %v389 = vmax.f32 %v304, 0.0
    %v390 = vmax.f32 %v306, 0.0
    %v391 = vmax.f32 %v381, 0.0
    %v392 = vmax.f32 %v383, 0.0
    %s393 = sld [smem:[#allocation2]]
    %s394 = sld [smem:[#allocation2 + $0x1]]
    %v395 = vstv %s393
    %v396 = vmul.f32 %v395, %v214
    %v397 = vmul.f32 %v395, %v215
    %v398 = vmul.f32 %v395, %v216
    %v399 = vmul.f32 %v395, %v217
    %v400 = vmul.f32 %v395, %v218
    %v401 = vmul.f32 %v395, %v219
    %v402 = vmul.f32 %v395, %v220
    %v403 = vmul.f32 %v395, %v221
    %v404 = vstv %s394
    %v405 = vmul.f32 %v404, %v385
    %v406 = vmul.f32 %v404, %v386
    %v407 = vmul.f32 %v404, %v387
    %v408 = vmul.f32 %v404, %v388
    %v409 = vmul.f32 %v404, %v389
    %v410 = vmul.f32 %v404, %v390
    %v411 = vmul.f32 %v404, %v391
    %v412 = vmul.f32 %v404, %v392
    %v413 = vadd.f32 %v396, %v405
    %v414 = vadd.f32 %v397, %v406
    %v415 = vadd.f32 %v398, %v407
    %v416 = vadd.f32 %v399, %v408
    %v417 = vadd.f32 %v400, %v409
    %v418 = vadd.f32 %v401, %v410
    %v419 = vadd.f32 %v402, %v411
    %v420 = vadd.f32 %v403, %v412
    %s421 = scalar_lea.vmem %s3, 16
    %v422 = vld [vmem:[%s421] sm:$0xff]
    %v423 = vld [vmem:[%s421 + $0x8] sm:$0xff]
    %v425 = vsel %vm224, %v422, 0
    %v428 = vsel %vm224, %v423, 0
    %430 = vmatprep.subr.mxu0 %v414
    %431 = vmatpush1.msra.mxu0 %v413
    %432 = vmatprep.subr.mxu0 %v418
    %433 = vmatpush1.msra.mxu0 %v417
    %434 = vmatprep.subr.mxu0 0.0
    %435 = vmatpush1.msra.mxu0 0.0
    %436 = vmatprep.subr.mxu0 0.0
    %437 = vmatpush1.msra.mxu0 0.0
    %438 = vmatprep.subr.mxu0 0.0
    %439 = vmatpush1.msra.mxu0 0.0
    %440 = vmatprep.subr.mxu0 0.0
    %441 = vmatpush1.msra.mxu0 0.0
    %442 = vmatprep.subr.mxu0 0.0
    %443 = vmatpush1.msra.mxu0 0.0
    %444 = vmatprep.subr.mxu0 0.0
    %445 = vmatpush1.msra.mxu0 0.0
    %446 = vmatprep.subr.mxu0 0.0
    %447 = vmatpush1.msra.mxu0 0.0
    %448 = vmatprep.subr.mxu0 0.0
    %449 = vmatpush1.msra.mxu0 0.0
    %450 = vmatprep.subr.mxu0 0.0
    %451 = vmatpush1.msra.mxu0 0.0
    %452 = vmatprep.subr.mxu0 0.0
    %453 = vmatpush1.msra.mxu0 0.0
    %454 = vmatprep.subr.mxu0 0.0
    %455 = vmatpush1.msra.mxu0 0.0
    %456 = vmatprep.subr.mxu0 0.0
    %457 = vmatpush1.msra.mxu0 0.0
    %458 = vmatprep.subr.mxu0 0.0
    %459 = vmatpush1.msra.mxu0 0.0
    %460 = vmatprep.subr.mxu0 0.0
    %461 = vmatpush1.msra.mxu0 0.0
    %462 = vmatprep.subr.mxu0 0.0
    %463 = vmatpush1.msra.mxu0 0.0
    %464 = vmatprep.subr.mxu0 0.0
    %465 = vmatpush1.msra.mxu0 0.0
    %466 = vmatprep.subr.mxu0 0.0
    %467 = vmatpush1.msra.mxu0 0.0
    %468 = vmatprep.subr.mxu0 0.0
    %469 = vmatpush1.msra.mxu0 0.0
    %470 = vmatprep.subr.mxu0 0.0
    %471 = vmatpush1.msra.mxu0 0.0
    %472 = vmatprep.subr.mxu0 0.0
    %473 = vmatpush1.msra.mxu0 0.0
    %474 = vmatprep.subr.mxu0 0.0
    %475 = vmatpush1.msra.mxu0 0.0
    %476 = vmatprep.subr.mxu0 0.0
    %477 = vmatpush1.msra.mxu0 0.0
    %478 = vmatprep.subr.mxu0 0.0
    %479 = vmatpush1.msra.mxu0 0.0
    %480 = vmatprep.subr.mxu0 0.0
    %481 = vmatpush1.msra.mxu0 0.0
    %482 = vmatprep.subr.mxu0 0.0
    %483 = vmatpush1.msra.mxu0 0.0
    %484 = vmatprep.subr.mxu0 0.0
    %485 = vmatpush1.msra.mxu0 0.0
    %486 = vmatprep.subr.mxu0 0.0
    %487 = vmatpush1.msra.mxu0 0.0
    %488 = vmatprep.subr.mxu0 0.0
    %489 = vmatpush1.msra.mxu0 0.0
    %490 = vmatprep.subr.mxu0 0.0
    %491 = vmatpush1.msra.mxu0 0.0
    %492 = vmatprep.subr.mxu0 0.0
    %493 = vmatpush1.msra.mxu0 0.0
    %494 = vmatprep.mubr.f32.mxu0 0.0
    %495 = vmatmul.mubr.f32.gmra.mrb[0].mxu0 %v425
    %v496 = vpop.f32.mrb[0].mxu0
    %v497 = vadd.f32 0.0, %v496
    %v498 = vpop.f32.mrb[0].mxu0
    %v499 = vadd.f32 0.0, %v498
    %500 = vmatprep.mubr.f32.mxu0 0.0
    %501 = vmatmul.mubr.f32.gmra.mrb[0].mxu0 %v428
    %v502 = vpop.f32.mrb[0].mxu0
    %v503 = vadd.f32 0.0, %v502
    %v504 = vpop.f32.mrb[0].mxu0
    %v505 = vadd.f32 0.0, %v504
    %506 = vdwg.mxu0
    %507 = vmatprep.subr.mxu0 %v416
    %508 = vmatpush1.msra.mxu0 %v415
    %509 = vmatprep.subr.mxu0 %v420
    %510 = vmatpush1.msra.mxu0 %v419
    %511 = vmatprep.subr.mxu0 0.0
    %512 = vmatpush1.msra.mxu0 0.0
    %513 = vmatprep.subr.mxu0 0.0
    %514 = vmatpush1.msra.mxu0 0.0
    %515 = vmatprep.subr.mxu0 0.0
    %516 = vmatpush1.msra.mxu0 0.0
    %517 = vmatprep.subr.mxu0 0.0
    %518 = vmatpush1.msra.mxu0 0.0
    %519 = vmatprep.subr.mxu0 0.0
    %520 = vmatpush1.msra.mxu0 0.0
    %521 = vmatprep.subr.mxu0 0.0
    %522 = vmatpush1.msra.mxu0 0.0
    %523 = vmatprep.subr.mxu0 0.0
    %524 = vmatpush1.msra.mxu0 0.0
    %525 = vmatprep.subr.mxu0 0.0
    %526 = vmatpush1.msra.mxu0 0.0
    %527 = vmatprep.subr.mxu0 0.0
    %528 = vmatpush1.msra.mxu0 0.0
    %529 = vmatprep.subr.mxu0 0.0
    %530 = vmatpush1.msra.mxu0 0.0
    %531 = vmatprep.subr.mxu0 0.0
    %532 = vmatpush1.msra.mxu0 0.0
    %533 = vmatprep.subr.mxu0 0.0
    %534 = vmatpush1.msra.mxu0 0.0
    %535 = vmatprep.subr.mxu0 0.0
    %536 = vmatpush1.msra.mxu0 0.0
    %537 = vmatprep.subr.mxu0 0.0
    %538 = vmatpush1.msra.mxu0 0.0
    %539 = vmatprep.subr.mxu0 0.0
    %540 = vmatpush1.msra.mxu0 0.0
    %541 = vmatprep.subr.mxu0 0.0
    %542 = vmatpush1.msra.mxu0 0.0
    %543 = vmatprep.subr.mxu0 0.0
    %544 = vmatpush1.msra.mxu0 0.0
    %545 = vmatprep.subr.mxu0 0.0
    %546 = vmatpush1.msra.mxu0 0.0
    %547 = vmatprep.subr.mxu0 0.0
    %548 = vmatpush1.msra.mxu0 0.0
    %549 = vmatprep.subr.mxu0 0.0
    %550 = vmatpush1.msra.mxu0 0.0
    %551 = vmatprep.subr.mxu0 0.0
    %552 = vmatpush1.msra.mxu0 0.0
    %553 = vmatprep.subr.mxu0 0.0
    %554 = vmatpush1.msra.mxu0 0.0
    %555 = vmatprep.subr.mxu0 0.0
    %556 = vmatpush1.msra.mxu0 0.0
    %557 = vmatprep.subr.mxu0 0.0
    %558 = vmatpush1.msra.mxu0 0.0
    %559 = vmatprep.subr.mxu0 0.0
    %560 = vmatpush1.msra.mxu0 0.0
    %561 = vmatprep.subr.mxu0 0.0
    %562 = vmatpush1.msra.mxu0 0.0
    %563 = vmatprep.subr.mxu0 0.0
    %564 = vmatpush1.msra.mxu0 0.0
    %565 = vmatprep.subr.mxu0 0.0
    %566 = vmatpush1.msra.mxu0 0.0
    %567 = vmatprep.subr.mxu0 0.0
    %568 = vmatpush1.msra.mxu0 0.0
    %569 = vmatprep.subr.mxu0 0.0
    %570 = vmatpush1.msra.mxu0 0.0
    %571 = vmatprep.mubr.f32.mxu0 0.0
    %572 = vmatmul.mubr.f32.gmra.mrb[0].mxu0 %v425
    %v573 = vpop.f32.mrb[0].mxu0
    %v574 = vadd.f32 0.0, %v573
    %v575 = vpop.f32.mrb[0].mxu0
    %v576 = vadd.f32 0.0, %v575
    %577 = vmatprep.mubr.f32.mxu0 0.0
    %578 = vmatmul.mubr.f32.gmra.mrb[0].mxu0 %v428
    %v579 = vpop.f32.mrb[0].mxu0
    %v580 = vadd.f32 0.0, %v579
    %v581 = vpop.f32.mrb[0].mxu0
    %v582 = vadd.f32 0.0, %v581
    %583 = vdwg.mxu0
    %v584 = vmax.f32 %v497, 0.0
    %v585 = vmax.f32 %v499, 0.0
    %v586 = vmax.f32 %v574, 0.0
    %v587 = vmax.f32 %v576, 0.0
    %v588 = vmax.f32 %v503, 0.0
    %v589 = vmax.f32 %v505, 0.0
    %v590 = vmax.f32 %v580, 0.0
    %v591 = vmax.f32 %v582, 0.0
    %s592 = sld [smem:[#allocation2 + $0x80]]
    %s593 = sld [smem:[#allocation2 + $0x81]]
    %v594 = vstv %s592
    %v595 = vmul.f32 %v594, %v413
    %v596 = vmul.f32 %v594, %v414
    %v597 = vmul.f32 %v594, %v415
    %v598 = vmul.f32 %v594, %v416
    %v599 = vmul.f32 %v594, %v417
    %v600 = vmul.f32 %v594, %v418
    %v601 = vmul.f32 %v594, %v419
    %v602 = vmul.f32 %v594, %v420
    %v603 = vstv %s593
    %v604 = vmul.f32 %v603, %v584
    %v605 = vmul.f32 %v603, %v585
    %v606 = vmul.f32 %v603, %v586
    %v607 = vmul.f32 %v603, %v587
    %v608 = vmul.f32 %v603, %v588
    %v609 = vmul.f32 %v603, %v589
    %v610 = vmul.f32 %v603, %v590
    %v611 = vmul.f32 %v603, %v591
    %v612 = vadd.f32 %v595, %v604
    %v613 = vadd.f32 %v596, %v605
    %v614 = vadd.f32 %v597, %v606
    %v615 = vadd.f32 %v598, %v607
    %v616 = vadd.f32 %v599, %v608
    %v617 = vadd.f32 %v600, %v609
    %v618 = vadd.f32 %v601, %v610
    %v619 = vadd.f32 %v602, %v611
    %s620 = scalar_lea.vmem %s3, 32
    %v621 = vld [vmem:[%s620] sm:$0xff]
    %v622 = vld [vmem:[%s620 + $0x8] sm:$0xff]
    %v624 = vsel %vm224, %v621, 0
    %v627 = vsel %vm224, %v622, 0
    %629 = vmatprep.subr.mxu0 %v613
    %630 = vmatpush1.msra.mxu0 %v612
    %631 = vmatprep.subr.mxu0 %v617
    %632 = vmatpush1.msra.mxu0 %v616
    %633 = vmatprep.subr.mxu0 0.0
    %634 = vmatpush1.msra.mxu0 0.0
    %635 = vmatprep.subr.mxu0 0.0
    %636 = vmatpush1.msra.mxu0 0.0
    %637 = vmatprep.subr.mxu0 0.0
    %638 = vmatpush1.msra.mxu0 0.0
    %639 = vmatprep.subr.mxu0 0.0
    %640 = vmatpush1.msra.mxu0 0.0
    %641 = vmatprep.subr.mxu0 0.0
    %642 = vmatpush1.msra.mxu0 0.0
    %643 = vmatprep.subr.mxu0 0.0
    %644 = vmatpush1.msra.mxu0 0.0
    %645 = vmatprep.subr.mxu0 0.0
    %646 = vmatpush1.msra.mxu0 0.0
    %647 = vmatprep.subr.mxu0 0.0
    %648 = vmatpush1.msra.mxu0 0.0
    %649 = vmatprep.subr.mxu0 0.0
    %650 = vmatpush1.msra.mxu0 0.0
    %651 = vmatprep.subr.mxu0 0.0
    %652 = vmatpush1.msra.mxu0 0.0
    %653 = vmatprep.subr.mxu0 0.0
    %654 = vmatpush1.msra.mxu0 0.0
    %655 = vmatprep.subr.mxu0 0.0
    %656 = vmatpush1.msra.mxu0 0.0
    %657 = vmatprep.subr.mxu0 0.0
    %658 = vmatpush1.msra.mxu0 0.0
    %659 = vmatprep.subr.mxu0 0.0
    %660 = vmatpush1.msra.mxu0 0.0
    %661 = vmatprep.subr.mxu0 0.0
    %662 = vmatpush1.msra.mxu0 0.0
    %663 = vmatprep.subr.mxu0 0.0
    %664 = vmatpush1.msra.mxu0 0.0
    %665 = vmatprep.subr.mxu0 0.0
    %666 = vmatpush1.msra.mxu0 0.0
    %667 = vmatprep.subr.mxu0 0.0
    %668 = vmatpush1.msra.mxu0 0.0
    %669 = vmatprep.subr.mxu0 0.0
    %670 = vmatpush1.msra.mxu0 0.0
    %671 = vmatprep.subr.mxu0 0.0
    %672 = vmatpush1.msra.mxu0 0.0
    %673 = vmatprep.subr.mxu0 0.0
    %674 = vmatpush1.msra.mxu0 0.0
    %675 = vmatprep.subr.mxu0 0.0
    %676 = vmatpush1.msra.mxu0 0.0
    %677 = vmatprep.subr.mxu0 0.0
    %678 = vmatpush1.msra.mxu0 0.0
    %679 = vmatprep.subr.mxu0 0.0
    %680 = vmatpush1.msra.mxu0 0.0
    %681 = vmatprep.subr.mxu0 0.0
    %682 = vmatpush1.msra.mxu0 0.0
    %683 = vmatprep.subr.mxu0 0.0
    %684 = vmatpush1.msra.mxu0 0.0
    %685 = vmatprep.subr.mxu0 0.0
    %686 = vmatpush1.msra.mxu0 0.0
    %687 = vmatprep.subr.mxu0 0.0
    %688 = vmatpush1.msra.mxu0 0.0
    %689 = vmatprep.subr.mxu0 0.0
    %690 = vmatpush1.msra.mxu0 0.0
    %691 = vmatprep.subr.mxu0 0.0
    %692 = vmatpush1.msra.mxu0 0.0
    %693 = vmatprep.mubr.f32.mxu0 0.0
    %694 = vmatmul.mubr.f32.gmra.mrb[0].mxu0 %v624
    %v695 = vpop.f32.mrb[0].mxu0
    %v696 = vadd.f32 0.0, %v695
    %v697 = vpop.f32.mrb[0].mxu0
    %v698 = vadd.f32 0.0, %v697
    %699 = vmatprep.mubr.f32.mxu0 0.0
    %700 = vmatmul.mubr.f32.gmra.mrb[0].mxu0 %v627
    %v701 = vpop.f32.mrb[0].mxu0
    %v702 = vadd.f32 0.0, %v701
    %v703 = vpop.f32.mrb[0].mxu0
    %v704 = vadd.f32 0.0, %v703
    %705 = vdwg.mxu0
    %706 = vmatprep.subr.mxu0 %v615
    %707 = vmatpush1.msra.mxu0 %v614
    %708 = vmatprep.subr.mxu0 %v619
    %709 = vmatpush1.msra.mxu0 %v618
    %710 = vmatprep.subr.mxu0 0.0
    %711 = vmatpush1.msra.mxu0 0.0
    %712 = vmatprep.subr.mxu0 0.0
    %713 = vmatpush1.msra.mxu0 0.0
    %714 = vmatprep.subr.mxu0 0.0
    %715 = vmatpush1.msra.mxu0 0.0
    %716 = vmatprep.subr.mxu0 0.0
    %717 = vmatpush1.msra.mxu0 0.0
    %718 = vmatprep.subr.mxu0 0.0
    %719 = vmatpush1.msra.mxu0 0.0
    %720 = vmatprep.subr.mxu0 0.0
    %721 = vmatpush1.msra.mxu0 0.0
    %722 = vmatprep.subr.mxu0 0.0
    %723 = vmatpush1.msra.mxu0 0.0
    %724 = vmatprep.subr.mxu0 0.0
    %725 = vmatpush1.msra.mxu0 0.0
    %726 = vmatprep.subr.mxu0 0.0
    %727 = vmatpush1.msra.mxu0 0.0
    %728 = vmatprep.subr.mxu0 0.0
    %729 = vmatpush1.msra.mxu0 0.0
    %730 = vmatprep.subr.mxu0 0.0
    %731 = vmatpush1.msra.mxu0 0.0
    %732 = vmatprep.subr.mxu0 0.0
    %733 = vmatpush1.msra.mxu0 0.0
    %734 = vmatprep.subr.mxu0 0.0
    %735 = vmatpush1.msra.mxu0 0.0
    %736 = vmatprep.subr.mxu0 0.0
    %737 = vmatpush1.msra.mxu0 0.0
    %738 = vmatprep.subr.mxu0 0.0
    %739 = vmatpush1.msra.mxu0 0.0
    %740 = vmatprep.subr.mxu0 0.0
    %741 = vmatpush1.msra.mxu0 0.0
    %742 = vmatprep.subr.mxu0 0.0
    %743 = vmatpush1.msra.mxu0 0.0
    %744 = vmatprep.subr.mxu0 0.0
    %745 = vmatpush1.msra.mxu0 0.0
    %746 = vmatprep.subr.mxu0 0.0
    %747 = vmatpush1.msra.mxu0 0.0
    %748 = vmatprep.subr.mxu0 0.0
    %749 = vmatpush1.msra.mxu0 0.0
    %750 = vmatprep.subr.mxu0 0.0
    %751 = vmatpush1.msra.mxu0 0.0
    %752 = vmatprep.subr.mxu0 0.0
    %753 = vmatpush1.msra.mxu0 0.0
    %754 = vmatprep.subr.mxu0 0.0
    %755 = vmatpush1.msra.mxu0 0.0
    %756 = vmatprep.subr.mxu0 0.0
    %757 = vmatpush1.msra.mxu0 0.0
    %758 = vmatprep.subr.mxu0 0.0
    %759 = vmatpush1.msra.mxu0 0.0
    %760 = vmatprep.subr.mxu0 0.0
    %761 = vmatpush1.msra.mxu0 0.0
    %762 = vmatprep.subr.mxu0 0.0
    %763 = vmatpush1.msra.mxu0 0.0
    %764 = vmatprep.subr.mxu0 0.0
    %765 = vmatpush1.msra.mxu0 0.0
    %766 = vmatprep.subr.mxu0 0.0
    %767 = vmatpush1.msra.mxu0 0.0
    %768 = vmatprep.subr.mxu0 0.0
    %769 = vmatpush1.msra.mxu0 0.0
    %770 = vmatprep.mubr.f32.mxu0 0.0
    %771 = vmatmul.mubr.f32.gmra.mrb[0].mxu0 %v624
    %v772 = vpop.f32.mrb[0].mxu0
    %v773 = vadd.f32 0.0, %v772
    %v774 = vpop.f32.mrb[0].mxu0
    %v775 = vadd.f32 0.0, %v774
    %776 = vmatprep.mubr.f32.mxu0 0.0
    %777 = vmatmul.mubr.f32.gmra.mrb[0].mxu0 %v627
    %v778 = vpop.f32.mrb[0].mxu0
    %v779 = vadd.f32 0.0, %v778
    %v780 = vpop.f32.mrb[0].mxu0
    %v781 = vadd.f32 0.0, %v780
    %782 = vdwg.mxu0
    %v783 = vmax.f32 %v696, 0.0
    %v784 = vmax.f32 %v698, 0.0
    %v785 = vmax.f32 %v773, 0.0
    %v786 = vmax.f32 %v775, 0.0
    %v787 = vmax.f32 %v702, 0.0
    %v788 = vmax.f32 %v704, 0.0
    %v789 = vmax.f32 %v779, 0.0
    %v790 = vmax.f32 %v781, 0.0
    %s791 = sld [smem:[#allocation2 + $0x100]]
    %s792 = sld [smem:[#allocation2 + $0x101]]
    %v793 = vstv %s791
    %v794 = vmul.f32 %v793, %v612
    %v795 = vmul.f32 %v793, %v613
    %v796 = vmul.f32 %v793, %v614
    %v797 = vmul.f32 %v793, %v615
    %v798 = vmul.f32 %v793, %v616
    %v799 = vmul.f32 %v793, %v617
    %v800 = vmul.f32 %v793, %v618
    %v801 = vmul.f32 %v793, %v619
    %v802 = vstv %s792
    %v803 = vmul.f32 %v802, %v783
    %v804 = vmul.f32 %v802, %v784
    %v805 = vmul.f32 %v802, %v785
    %v806 = vmul.f32 %v802, %v786
    %v807 = vmul.f32 %v802, %v787
    %v808 = vmul.f32 %v802, %v788
    %v809 = vmul.f32 %v802, %v789
    %v810 = vmul.f32 %v802, %v790
    %v811 = vadd.f32 %v794, %v803
    %v812 = vadd.f32 %v795, %v804
    %v813 = vadd.f32 %v796, %v805
    %v814 = vadd.f32 %v797, %v806
    %v815 = vadd.f32 %v798, %v807
    %v816 = vadd.f32 %v799, %v808
    %v817 = vadd.f32 %v800, %v809
    %v818 = vadd.f32 %v801, %v810
    %s819 = scalar_lea.vmem %s3, 48
    %v820 = vld [vmem:[%s819] sm:$0xff]
    %v821 = vld [vmem:[%s819 + $0x8] sm:$0xff]
    %v823 = vsel %vm224, %v820, 0
    %v826 = vsel %vm224, %v821, 0
    %828 = vmatprep.subr.mxu0 %v812
    %829 = vmatpush1.msra.mxu0 %v811
    %830 = vmatprep.subr.mxu0 %v816
    %831 = vmatpush1.msra.mxu0 %v815
    %832 = vmatprep.subr.mxu0 0.0
    %833 = vmatpush1.msra.mxu0 0.0
    %834 = vmatprep.subr.mxu0 0.0
    %835 = vmatpush1.msra.mxu0 0.0
    %836 = vmatprep.subr.mxu0 0.0
    %837 = vmatpush1.msra.mxu0 0.0
    %838 = vmatprep.subr.mxu0 0.0
    %839 = vmatpush1.msra.mxu0 0.0
    %840 = vmatprep.subr.mxu0 0.0
    %841 = vmatpush1.msra.mxu0 0.0
    %842 = vmatprep.subr.mxu0 0.0
    %843 = vmatpush1.msra.mxu0 0.0
    %844 = vmatprep.subr.mxu0 0.0
    %845 = vmatpush1.msra.mxu0 0.0
    %846 = vmatprep.subr.mxu0 0.0
    %847 = vmatpush1.msra.mxu0 0.0
    %848 = vmatprep.subr.mxu0 0.0
    %849 = vmatpush1.msra.mxu0 0.0
    %850 = vmatprep.subr.mxu0 0.0
    %851 = vmatpush1.msra.mxu0 0.0
    %852 = vmatprep.subr.mxu0 0.0
    %853 = vmatpush1.msra.mxu0 0.0
    %854 = vmatprep.subr.mxu0 0.0
    %855 = vmatpush1.msra.mxu0 0.0
    %856 = vmatprep.subr.mxu0 0.0
    %857 = vmatpush1.msra.mxu0 0.0
    %858 = vmatprep.subr.mxu0 0.0
    %859 = vmatpush1.msra.mxu0 0.0
    %860 = vmatprep.subr.mxu0 0.0
    %861 = vmatpush1.msra.mxu0 0.0
    %862 = vmatprep.subr.mxu0 0.0
    %863 = vmatpush1.msra.mxu0 0.0
    %864 = vmatprep.subr.mxu0 0.0
    %865 = vmatpush1.msra.mxu0 0.0
    %866 = vmatprep.subr.mxu0 0.0
    %867 = vmatpush1.msra.mxu0 0.0
    %868 = vmatprep.subr.mxu0 0.0
    %869 = vmatpush1.msra.mxu0 0.0
    %870 = vmatprep.subr.mxu0 0.0
    %871 = vmatpush1.msra.mxu0 0.0
    %872 = vmatprep.subr.mxu0 0.0
    %873 = vmatpush1.msra.mxu0 0.0
    %874 = vmatprep.subr.mxu0 0.0
    %875 = vmatpush1.msra.mxu0 0.0
    %876 = vmatprep.subr.mxu0 0.0
    %877 = vmatpush1.msra.mxu0 0.0
    %878 = vmatprep.subr.mxu0 0.0
    %879 = vmatpush1.msra.mxu0 0.0
    %880 = vmatprep.subr.mxu0 0.0
    %881 = vmatpush1.msra.mxu0 0.0
    %882 = vmatprep.subr.mxu0 0.0
    %883 = vmatpush1.msra.mxu0 0.0
    %884 = vmatprep.subr.mxu0 0.0
    %885 = vmatpush1.msra.mxu0 0.0
    %886 = vmatprep.subr.mxu0 0.0
    %887 = vmatpush1.msra.mxu0 0.0
    %888 = vmatprep.subr.mxu0 0.0
    %889 = vmatpush1.msra.mxu0 0.0
    %890 = vmatprep.subr.mxu0 0.0
    %891 = vmatpush1.msra.mxu0 0.0
    %892 = vmatprep.mubr.f32.mxu0 0.0
    %893 = vmatmul.mubr.f32.gmra.mrb[0].mxu0 %v823
    %v894 = vpop.f32.mrb[0].mxu0
    %v895 = vadd.f32 0.0, %v894
    %v896 = vpop.f32.mrb[0].mxu0
    %v897 = vadd.f32 0.0, %v896
    %898 = vmatprep.mubr.f32.mxu0 0.0
    %899 = vmatmul.mubr.f32.gmra.mrb[0].mxu0 %v826
    %v900 = vpop.f32.mrb[0].mxu0
    %v901 = vadd.f32 0.0, %v900
    %v902 = vpop.f32.mrb[0].mxu0
    %v903 = vadd.f32 0.0, %v902
    %904 = vdwg.mxu0
    %905 = vmatprep.subr.mxu0 %v814
    %906 = vmatpush1.msra.mxu0 %v813
    %907 = vmatprep.subr.mxu0 %v818
    %908 = vmatpush1.msra.mxu0 %v817
    %909 = vmatprep.subr.mxu0 0.0
    %910 = vmatpush1.msra.mxu0 0.0
    %911 = vmatprep.subr.mxu0 0.0
    %912 = vmatpush1.msra.mxu0 0.0
    %913 = vmatprep.subr.mxu0 0.0
    %914 = vmatpush1.msra.mxu0 0.0
    %915 = vmatprep.subr.mxu0 0.0
    %916 = vmatpush1.msra.mxu0 0.0
    %917 = vmatprep.subr.mxu0 0.0
    %918 = vmatpush1.msra.mxu0 0.0
    %919 = vmatprep.subr.mxu0 0.0
    %920 = vmatpush1.msra.mxu0 0.0
    %921 = vmatprep.subr.mxu0 0.0
    %922 = vmatpush1.msra.mxu0 0.0
    %923 = vmatprep.subr.mxu0 0.0
    %924 = vmatpush1.msra.mxu0 0.0
    %925 = vmatprep.subr.mxu0 0.0
    %926 = vmatpush1.msra.mxu0 0.0
    %927 = vmatprep.subr.mxu0 0.0
    %928 = vmatpush1.msra.mxu0 0.0
    %929 = vmatprep.subr.mxu0 0.0
    %930 = vmatpush1.msra.mxu0 0.0
    %931 = vmatprep.subr.mxu0 0.0
    %932 = vmatpush1.msra.mxu0 0.0
    %933 = vmatprep.subr.mxu0 0.0
    %934 = vmatpush1.msra.mxu0 0.0
    %935 = vmatprep.subr.mxu0 0.0
    %936 = vmatpush1.msra.mxu0 0.0
    %937 = vmatprep.subr.mxu0 0.0
    %938 = vmatpush1.msra.mxu0 0.0
    %939 = vmatprep.subr.mxu0 0.0
    %940 = vmatpush1.msra.mxu0 0.0
    %941 = vmatprep.subr.mxu0 0.0
    %942 = vmatpush1.msra.mxu0 0.0
    %943 = vmatprep.subr.mxu0 0.0
    %944 = vmatpush1.msra.mxu0 0.0
    %945 = vmatprep.subr.mxu0 0.0
    %946 = vmatpush1.msra.mxu0 0.0
    %947 = vmatprep.subr.mxu0 0.0
    %948 = vmatpush1.msra.mxu0 0.0
    %949 = vmatprep.subr.mxu0 0.0
    %950 = vmatpush1.msra.mxu0 0.0
    %951 = vmatprep.subr.mxu0 0.0
    %952 = vmatpush1.msra.mxu0 0.0
    %953 = vmatprep.subr.mxu0 0.0
    %954 = vmatpush1.msra.mxu0 0.0
    %955 = vmatprep.subr.mxu0 0.0
    %956 = vmatpush1.msra.mxu0 0.0
    %957 = vmatprep.subr.mxu0 0.0
    %958 = vmatpush1.msra.mxu0 0.0
    %959 = vmatprep.subr.mxu0 0.0
    %960 = vmatpush1.msra.mxu0 0.0
    %961 = vmatprep.subr.mxu0 0.0
    %962 = vmatpush1.msra.mxu0 0.0
    %963 = vmatprep.subr.mxu0 0.0
    %964 = vmatpush1.msra.mxu0 0.0
    %965 = vmatprep.subr.mxu0 0.0
    %966 = vmatpush1.msra.mxu0 0.0
    %967 = vmatprep.subr.mxu0 0.0
    %968 = vmatpush1.msra.mxu0 0.0
    %969 = vmatprep.mubr.f32.mxu0 0.0
    %970 = vmatmul.mubr.f32.gmra.mrb[0].mxu0 %v823
    %v971 = vpop.f32.mrb[0].mxu0
    %v972 = vadd.f32 0.0, %v971
    %v973 = vpop.f32.mrb[0].mxu0
    %v974 = vadd.f32 0.0, %v973
    %975 = vmatprep.mubr.f32.mxu0 0.0
    %976 = vmatmul.mubr.f32.gmra.mrb[0].mxu0 %v826
    %v977 = vpop.f32.mrb[0].mxu0
    %v978 = vadd.f32 0.0, %v977
    %v979 = vpop.f32.mrb[0].mxu0
    %v980 = vadd.f32 0.0, %v979
    %981 = vdwg.mxu0
    %v982 = vmax.f32 %v895, 0.0
    %v983 = vmax.f32 %v897, 0.0
    %v984 = vmax.f32 %v972, 0.0
    %v985 = vmax.f32 %v974, 0.0
    %v986 = vmax.f32 %v901, 0.0
    %v987 = vmax.f32 %v903, 0.0
    %v988 = vmax.f32 %v978, 0.0
    %v989 = vmax.f32 %v980, 0.0
    %s990 = sld [smem:[#allocation2 + $0x180]]
    %s991 = sld [smem:[#allocation2 + $0x181]]
    %v992 = vstv %s990
    %v993 = vmul.f32 %v992, %v811
    %v994 = vmul.f32 %v992, %v812
    %v995 = vmul.f32 %v992, %v813
    %v996 = vmul.f32 %v992, %v814
    %v997 = vmul.f32 %v992, %v815
    %v998 = vmul.f32 %v992, %v816
    %v999 = vmul.f32 %v992, %v817
    %v1000 = vmul.f32 %v992, %v818
    %v1001 = vstv %s991
    %v1002 = vmul.f32 %v1001, %v982
    %v1003 = vmul.f32 %v1001, %v983
    %v1004 = vmul.f32 %v1001, %v984
    %v1005 = vmul.f32 %v1001, %v985
    %v1006 = vmul.f32 %v1001, %v986
    %v1007 = vmul.f32 %v1001, %v987
    %v1008 = vmul.f32 %v1001, %v988
    %v1009 = vmul.f32 %v1001, %v989
    %v1010 = vadd.f32 %v993, %v1002
    %v1011 = vadd.f32 %v994, %v1003
    %v1012 = vadd.f32 %v995, %v1004
    %v1013 = vadd.f32 %v996, %v1005
    %v1014 = vadd.f32 %v997, %v1006
    %v1015 = vadd.f32 %v998, %v1007
    %v1016 = vadd.f32 %v999, %v1008
    %v1017 = vadd.f32 %v1000, %v1009
    %s1018 = scalar_lea.vmem %s3, 64
    %v1019 = vld [vmem:[%s1018] sm:$0xff]
    %v1020 = vld [vmem:[%s1018 + $0x8] sm:$0xff]
    %v1022 = vsel %vm224, %v1019, 0
    %v1025 = vsel %vm224, %v1020, 0
    %1027 = vmatprep.subr.mxu0 %v1011
    %1028 = vmatpush1.msra.mxu0 %v1010
    %1029 = vmatprep.subr.mxu0 %v1015
    %1030 = vmatpush1.msra.mxu0 %v1014
    %1031 = vmatprep.subr.mxu0 0.0
    %1032 = vmatpush1.msra.mxu0 0.0
    %1033 = vmatprep.subr.mxu0 0.0
    %1034 = vmatpush1.msra.mxu0 0.0
    %1035 = vmatprep.subr.mxu0 0.0
    %1036 = vmatpush1.msra.mxu0 0.0
    %1037 = vmatprep.subr.mxu0 0.0
    %1038 = vmatpush1.msra.mxu0 0.0
    %1039 = vmatprep.subr.mxu0 0.0
    %1040 = vmatpush1.msra.mxu0 0.0
    %1041 = vmatprep.subr.mxu0 0.0
    %1042 = vmatpush1.msra.mxu0 0.0
    %1043 = vmatprep.subr.mxu0 0.0
    %1044 = vmatpush1.msra.mxu0 0.0
    %1045 = vmatprep.subr.mxu0 0.0
    %1046 = vmatpush1.msra.mxu0 0.0
    %1047 = vmatprep.subr.mxu0 0.0
    %1048 = vmatpush1.msra.mxu0 0.0
    %1049 = vmatprep.subr.mxu0 0.0
    %1050 = vmatpush1.msra.mxu0 0.0
    %1051 = vmatprep.subr.mxu0 0.0
    %1052 = vmatpush1.msra.mxu0 0.0
    %1053 = vmatprep.subr.mxu0 0.0
    %1054 = vmatpush1.msra.mxu0 0.0
    %1055 = vmatprep.subr.mxu0 0.0
    %1056 = vmatpush1.msra.mxu0 0.0
    %1057 = vmatprep.subr.mxu0 0.0
    %1058 = vmatpush1.msra.mxu0 0.0
    %1059 = vmatprep.subr.mxu0 0.0
    %1060 = vmatpush1.msra.mxu0 0.0
    %1061 = vmatprep.subr.mxu0 0.0
    %1062 = vmatpush1.msra.mxu0 0.0
    %1063 = vmatprep.subr.mxu0 0.0
    %1064 = vmatpush1.msra.mxu0 0.0
    %1065 = vmatprep.subr.mxu0 0.0
    %1066 = vmatpush1.msra.mxu0 0.0
    %1067 = vmatprep.subr.mxu0 0.0
    %1068 = vmatpush1.msra.mxu0 0.0
    %1069 = vmatprep.subr.mxu0 0.0
    %1070 = vmatpush1.msra.mxu0 0.0
    %1071 = vmatprep.subr.mxu0 0.0
    %1072 = vmatpush1.msra.mxu0 0.0
    %1073 = vmatprep.subr.mxu0 0.0
    %1074 = vmatpush1.msra.mxu0 0.0
    %1075 = vmatprep.subr.mxu0 0.0
    %1076 = vmatpush1.msra.mxu0 0.0
    %1077 = vmatprep.subr.mxu0 0.0
    %1078 = vmatpush1.msra.mxu0 0.0
    %1079 = vmatprep.subr.mxu0 0.0
    %1080 = vmatpush1.msra.mxu0 0.0
    %1081 = vmatprep.subr.mxu0 0.0
    %1082 = vmatpush1.msra.mxu0 0.0
    %1083 = vmatprep.subr.mxu0 0.0
    %1084 = vmatpush1.msra.mxu0 0.0
    %1085 = vmatprep.subr.mxu0 0.0
    %1086 = vmatpush1.msra.mxu0 0.0
    %1087 = vmatprep.subr.mxu0 0.0
    %1088 = vmatpush1.msra.mxu0 0.0
    %1089 = vmatprep.subr.mxu0 0.0
    %1090 = vmatpush1.msra.mxu0 0.0
    %1091 = vmatprep.mubr.f32.mxu0 0.0
    %1092 = vmatmul.mubr.f32.gmra.mrb[0].mxu0 %v1022
    %v1093 = vpop.f32.mrb[0].mxu0
    %v1094 = vadd.f32 0.0, %v1093
    %v1095 = vpop.f32.mrb[0].mxu0
    %v1096 = vadd.f32 0.0, %v1095
    %1097 = vmatprep.mubr.f32.mxu0 0.0
    %1098 = vmatmul.mubr.f32.gmra.mrb[0].mxu0 %v1025
    %v1099 = vpop.f32.mrb[0].mxu0
    %v1100 = vadd.f32 0.0, %v1099
    %v1101 = vpop.f32.mrb[0].mxu0
    %v1102 = vadd.f32 0.0, %v1101
    %1103 = vdwg.mxu0
    %1104 = vmatprep.subr.mxu0 %v1013
    %1105 = vmatpush1.msra.mxu0 %v1012
    %1106 = vmatprep.subr.mxu0 %v1017
    %1107 = vmatpush1.msra.mxu0 %v1016
    %1108 = vmatprep.subr.mxu0 0.0
    %1109 = vmatpush1.msra.mxu0 0.0
    %1110 = vmatprep.subr.mxu0 0.0
    %1111 = vmatpush1.msra.mxu0 0.0
    %1112 = vmatprep.subr.mxu0 0.0
    %1113 = vmatpush1.msra.mxu0 0.0
    %1114 = vmatprep.subr.mxu0 0.0
    %1115 = vmatpush1.msra.mxu0 0.0
    %1116 = vmatprep.subr.mxu0 0.0
    %1117 = vmatpush1.msra.mxu0 0.0
    %1118 = vmatprep.subr.mxu0 0.0
    %1119 = vmatpush1.msra.mxu0 0.0
    %1120 = vmatprep.subr.mxu0 0.0
    %1121 = vmatpush1.msra.mxu0 0.0
    %1122 = vmatprep.subr.mxu0 0.0
    %1123 = vmatpush1.msra.mxu0 0.0
    %1124 = vmatprep.subr.mxu0 0.0
    %1125 = vmatpush1.msra.mxu0 0.0
    %1126 = vmatprep.subr.mxu0 0.0
    %1127 = vmatpush1.msra.mxu0 0.0
    %1128 = vmatprep.subr.mxu0 0.0
    %1129 = vmatpush1.msra.mxu0 0.0
    %1130 = vmatprep.subr.mxu0 0.0
    %1131 = vmatpush1.msra.mxu0 0.0
    %1132 = vmatprep.subr.mxu0 0.0
    %1133 = vmatpush1.msra.mxu0 0.0
    %1134 = vmatprep.subr.mxu0 0.0
    %1135 = vmatpush1.msra.mxu0 0.0
    %1136 = vmatprep.subr.mxu0 0.0
    %1137 = vmatpush1.msra.mxu0 0.0
    %1138 = vmatprep.subr.mxu0 0.0
    %1139 = vmatpush1.msra.mxu0 0.0
    %1140 = vmatprep.subr.mxu0 0.0
    %1141 = vmatpush1.msra.mxu0 0.0
    %1142 = vmatprep.subr.mxu0 0.0
    %1143 = vmatpush1.msra.mxu0 0.0
    %1144 = vmatprep.subr.mxu0 0.0
    %1145 = vmatpush1.msra.mxu0 0.0
    %1146 = vmatprep.subr.mxu0 0.0
    %1147 = vmatpush1.msra.mxu0 0.0
    %1148 = vmatprep.subr.mxu0 0.0
    %1149 = vmatpush1.msra.mxu0 0.0
    %1150 = vmatprep.subr.mxu0 0.0
    %1151 = vmatpush1.msra.mxu0 0.0
    %1152 = vmatprep.subr.mxu0 0.0
    %1153 = vmatpush1.msra.mxu0 0.0
    %1154 = vmatprep.subr.mxu0 0.0
    %1155 = vmatpush1.msra.mxu0 0.0
    %1156 = vmatprep.subr.mxu0 0.0
    %1157 = vmatpush1.msra.mxu0 0.0
    %1158 = vmatprep.subr.mxu0 0.0
    %1159 = vmatpush1.msra.mxu0 0.0
    %1160 = vmatprep.subr.mxu0 0.0
    %1161 = vmatpush1.msra.mxu0 0.0
    %1162 = vmatprep.subr.mxu0 0.0
    %1163 = vmatpush1.msra.mxu0 0.0
    %1164 = vmatprep.subr.mxu0 0.0
    %1165 = vmatpush1.msra.mxu0 0.0
    %1166 = vmatprep.subr.mxu0 0.0
    %1167 = vmatpush1.msra.mxu0 0.0
    %1168 = vmatprep.mubr.f32.mxu0 0.0
    %1169 = vmatmul.mubr.f32.gmra.mrb[0].mxu0 %v1022
    %v1170 = vpop.f32.mrb[0].mxu0
    %v1171 = vadd.f32 0.0, %v1170
    %v1172 = vpop.f32.mrb[0].mxu0
    %v1173 = vadd.f32 0.0, %v1172
    %1174 = vmatprep.mubr.f32.mxu0 0.0
    %1175 = vmatmul.mubr.f32.gmra.mrb[0].mxu0 %v1025
    %v1176 = vpop.f32.mrb[0].mxu0
    %v1177 = vadd.f32 0.0, %v1176
    %v1178 = vpop.f32.mrb[0].mxu0
    %v1179 = vadd.f32 0.0, %v1178
    %1180 = vdwg.mxu0
    %v1181 = vmax.f32 %v1094, 0.0
    %v1182 = vmax.f32 %v1096, 0.0
    %v1183 = vmax.f32 %v1171, 0.0
    %v1184 = vmax.f32 %v1173, 0.0
    %v1185 = vmax.f32 %v1100, 0.0
    %v1186 = vmax.f32 %v1102, 0.0
    %v1187 = vmax.f32 %v1177, 0.0
    %v1188 = vmax.f32 %v1179, 0.0
    %s1189 = sld [smem:[#allocation2 + $0x200]]
    %s1190 = sld [smem:[#allocation2 + $0x201]]
    %v1191 = vstv %s1189
    %v1192 = vmul.f32 %v1191, %v1010
    %v1193 = vmul.f32 %v1191, %v1011
    %v1194 = vmul.f32 %v1191, %v1012
    %v1195 = vmul.f32 %v1191, %v1013
    %v1196 = vmul.f32 %v1191, %v1014
    %v1197 = vmul.f32 %v1191, %v1015
    %v1198 = vmul.f32 %v1191, %v1016
    %v1199 = vmul.f32 %v1191, %v1017
    %v1200 = vstv %s1190
    %v1201 = vmul.f32 %v1200, %v1181
    %v1202 = vmul.f32 %v1200, %v1182
    %v1203 = vmul.f32 %v1200, %v1183
    %v1204 = vmul.f32 %v1200, %v1184
    %v1205 = vmul.f32 %v1200, %v1185
    %v1206 = vmul.f32 %v1200, %v1186
    %v1207 = vmul.f32 %v1200, %v1187
    %v1208 = vmul.f32 %v1200, %v1188
    %v1209 = vadd.f32 %v1192, %v1201
    %v1210 = vadd.f32 %v1193, %v1202
    %v1211 = vadd.f32 %v1194, %v1203
    %v1212 = vadd.f32 %v1195, %v1204
    %v1213 = vadd.f32 %v1196, %v1205
    %v1214 = vadd.f32 %v1197, %v1206
    %v1215 = vadd.f32 %v1198, %v1207
    %v1216 = vadd.f32 %v1199, %v1208
    %s1217 = scalar_lea.vmem %s3, 80
    %v1218 = vld [vmem:[%s1217] sm:$0xff]
    %v1219 = vld [vmem:[%s1217 + $0x8] sm:$0xff]
    %v1221 = vsel %vm224, %v1218, 0
    %v1224 = vsel %vm224, %v1219, 0
    %1226 = vmatprep.subr.mxu0 %v1210
    %1227 = vmatpush1.msra.mxu0 %v1209
    %1228 = vmatprep.subr.mxu0 %v1214
    %1229 = vmatpush1.msra.mxu0 %v1213
    %1230 = vmatprep.subr.mxu0 0.0
    %1231 = vmatpush1.msra.mxu0 0.0
    %1232 = vmatprep.subr.mxu0 0.0
    %1233 = vmatpush1.msra.mxu0 0.0
    %1234 = vmatprep.subr.mxu0 0.0
    %1235 = vmatpush1.msra.mxu0 0.0
    %1236 = vmatprep.subr.mxu0 0.0
    %1237 = vmatpush1.msra.mxu0 0.0
    %1238 = vmatprep.subr.mxu0 0.0
    %1239 = vmatpush1.msra.mxu0 0.0
    %1240 = vmatprep.subr.mxu0 0.0
    %1241 = vmatpush1.msra.mxu0 0.0
    %1242 = vmatprep.subr.mxu0 0.0
    %1243 = vmatpush1.msra.mxu0 0.0
    %1244 = vmatprep.subr.mxu0 0.0
    %1245 = vmatpush1.msra.mxu0 0.0
    %1246 = vmatprep.subr.mxu0 0.0
    %1247 = vmatpush1.msra.mxu0 0.0
    %1248 = vmatprep.subr.mxu0 0.0
    %1249 = vmatpush1.msra.mxu0 0.0
    %1250 = vmatprep.subr.mxu0 0.0
    %1251 = vmatpush1.msra.mxu0 0.0
    %1252 = vmatprep.subr.mxu0 0.0
    %1253 = vmatpush1.msra.mxu0 0.0
    %1254 = vmatprep.subr.mxu0 0.0
    %1255 = vmatpush1.msra.mxu0 0.0
    %1256 = vmatprep.subr.mxu0 0.0
    %1257 = vmatpush1.msra.mxu0 0.0
    %1258 = vmatprep.subr.mxu0 0.0
    %1259 = vmatpush1.msra.mxu0 0.0
    %1260 = vmatprep.subr.mxu0 0.0
    %1261 = vmatpush1.msra.mxu0 0.0
    %1262 = vmatprep.subr.mxu0 0.0
    %1263 = vmatpush1.msra.mxu0 0.0
    %1264 = vmatprep.subr.mxu0 0.0
    %1265 = vmatpush1.msra.mxu0 0.0
    %1266 = vmatprep.subr.mxu0 0.0
    %1267 = vmatpush1.msra.mxu0 0.0
    %1268 = vmatprep.subr.mxu0 0.0
    %1269 = vmatpush1.msra.mxu0 0.0
    %1270 = vmatprep.subr.mxu0 0.0
    %1271 = vmatpush1.msra.mxu0 0.0
    %1272 = vmatprep.subr.mxu0 0.0
    %1273 = vmatpush1.msra.mxu0 0.0
    %1274 = vmatprep.subr.mxu0 0.0
    %1275 = vmatpush1.msra.mxu0 0.0
    %1276 = vmatprep.subr.mxu0 0.0
    %1277 = vmatpush1.msra.mxu0 0.0
    %1278 = vmatprep.subr.mxu0 0.0
    %1279 = vmatpush1.msra.mxu0 0.0
    %1280 = vmatprep.subr.mxu0 0.0
    %1281 = vmatpush1.msra.mxu0 0.0
    %1282 = vmatprep.subr.mxu0 0.0
    %1283 = vmatpush1.msra.mxu0 0.0
    %1284 = vmatprep.subr.mxu0 0.0
    %1285 = vmatpush1.msra.mxu0 0.0
    %1286 = vmatprep.subr.mxu0 0.0
    %1287 = vmatpush1.msra.mxu0 0.0
    %1288 = vmatprep.subr.mxu0 0.0
    %1289 = vmatpush1.msra.mxu0 0.0
    %1290 = vmatprep.mubr.f32.mxu0 0.0
    %1291 = vmatmul.mubr.f32.gmra.mrb[0].mxu0 %v1221
    %v1292 = vpop.f32.mrb[0].mxu0
    %v1293 = vadd.f32 0.0, %v1292
    %v1294 = vpop.f32.mrb[0].mxu0
    %v1295 = vadd.f32 0.0, %v1294
    %1296 = vmatprep.mubr.f32.mxu0 0.0
    %1297 = vmatmul.mubr.f32.gmra.mrb[0].mxu0 %v1224
    %v1298 = vpop.f32.mrb[0].mxu0
    %v1299 = vadd.f32 0.0, %v1298
    %v1300 = vpop.f32.mrb[0].mxu0
    %v1301 = vadd.f32 0.0, %v1300
    %1302 = vdwg.mxu0
    %1303 = vmatprep.subr.mxu0 %v1212
    %1304 = vmatpush1.msra.mxu0 %v1211
    %1305 = vmatprep.subr.mxu0 %v1216
    %1306 = vmatpush1.msra.mxu0 %v1215
    %1307 = vmatprep.subr.mxu0 0.0
    %1308 = vmatpush1.msra.mxu0 0.0
    %1309 = vmatprep.subr.mxu0 0.0
    %1310 = vmatpush1.msra.mxu0 0.0
    %1311 = vmatprep.subr.mxu0 0.0
    %1312 = vmatpush1.msra.mxu0 0.0
    %1313 = vmatprep.subr.mxu0 0.0
    %1314 = vmatpush1.msra.mxu0 0.0
    %1315 = vmatprep.subr.mxu0 0.0
    %1316 = vmatpush1.msra.mxu0 0.0
    %1317 = vmatprep.subr.mxu0 0.0
    %1318 = vmatpush1.msra.mxu0 0.0
    %1319 = vmatprep.subr.mxu0 0.0
    %1320 = vmatpush1.msra.mxu0 0.0
    %1321 = vmatprep.subr.mxu0 0.0
    %1322 = vmatpush1.msra.mxu0 0.0
    %1323 = vmatprep.subr.mxu0 0.0
    %1324 = vmatpush1.msra.mxu0 0.0
    %1325 = vmatprep.subr.mxu0 0.0
    %1326 = vmatpush1.msra.mxu0 0.0
    %1327 = vmatprep.subr.mxu0 0.0
    %1328 = vmatpush1.msra.mxu0 0.0
    %1329 = vmatprep.subr.mxu0 0.0
    %1330 = vmatpush1.msra.mxu0 0.0
    %1331 = vmatprep.subr.mxu0 0.0
    %1332 = vmatpush1.msra.mxu0 0.0
    %1333 = vmatprep.subr.mxu0 0.0
    %1334 = vmatpush1.msra.mxu0 0.0
    %1335 = vmatprep.subr.mxu0 0.0
    %1336 = vmatpush1.msra.mxu0 0.0
    %1337 = vmatprep.subr.mxu0 0.0
    %1338 = vmatpush1.msra.mxu0 0.0
    %1339 = vmatprep.subr.mxu0 0.0
    %1340 = vmatpush1.msra.mxu0 0.0
    %1341 = vmatprep.subr.mxu0 0.0
    %1342 = vmatpush1.msra.mxu0 0.0
    %1343 = vmatprep.subr.mxu0 0.0
    %1344 = vmatpush1.msra.mxu0 0.0
    %1345 = vmatprep.subr.mxu0 0.0
    %1346 = vmatpush1.msra.mxu0 0.0
    %1347 = vmatprep.subr.mxu0 0.0
    %1348 = vmatpush1.msra.mxu0 0.0
    %1349 = vmatprep.subr.mxu0 0.0
    %1350 = vmatpush1.msra.mxu0 0.0
    %1351 = vmatprep.subr.mxu0 0.0
    %1352 = vmatpush1.msra.mxu0 0.0
    %1353 = vmatprep.subr.mxu0 0.0
    %1354 = vmatpush1.msra.mxu0 0.0
    %1355 = vmatprep.subr.mxu0 0.0
    %1356 = vmatpush1.msra.mxu0 0.0
    %1357 = vmatprep.subr.mxu0 0.0
    %1358 = vmatpush1.msra.mxu0 0.0
    %1359 = vmatprep.subr.mxu0 0.0
    %1360 = vmatpush1.msra.mxu0 0.0
    %1361 = vmatprep.subr.mxu0 0.0
    %1362 = vmatpush1.msra.mxu0 0.0
    %1363 = vmatprep.subr.mxu0 0.0
    %1364 = vmatpush1.msra.mxu0 0.0
    %1365 = vmatprep.subr.mxu0 0.0
    %1366 = vmatpush1.msra.mxu0 0.0
    %1367 = vmatprep.mubr.f32.mxu0 0.0
    %1368 = vmatmul.mubr.f32.gmra.mrb[0].mxu0 %v1221
    %v1369 = vpop.f32.mrb[0].mxu0
    %v1370 = vadd.f32 0.0, %v1369
    %v1371 = vpop.f32.mrb[0].mxu0
    %v1372 = vadd.f32 0.0, %v1371
    %1373 = vmatprep.mubr.f32.mxu0 0.0
    %1374 = vmatmul.mubr.f32.gmra.mrb[0].mxu0 %v1224
    %v1375 = vpop.f32.mrb[0].mxu0
    %v1376 = vadd.f32 0.0, %v1375
    %v1377 = vpop.f32.mrb[0].mxu0
    %v1378 = vadd.f32 0.0, %v1377
    %1379 = vdwg.mxu0
    %v1380 = vmax.f32 %v1293, 0.0
    %v1381 = vmax.f32 %v1295, 0.0
    %v1382 = vmax.f32 %v1370, 0.0
    %v1383 = vmax.f32 %v1372, 0.0
    %v1384 = vmax.f32 %v1299, 0.0
    %v1385 = vmax.f32 %v1301, 0.0
    %v1386 = vmax.f32 %v1376, 0.0
    %v1387 = vmax.f32 %v1378, 0.0
    %s1388 = sld [smem:[#allocation2 + $0x280]]
    %s1389 = sld [smem:[#allocation2 + $0x281]]
    %v1390 = vstv %s1388
    %v1391 = vmul.f32 %v1390, %v1209
    %v1392 = vmul.f32 %v1390, %v1210
    %v1393 = vmul.f32 %v1390, %v1211
    %v1394 = vmul.f32 %v1390, %v1212
    %v1395 = vmul.f32 %v1390, %v1213
    %v1396 = vmul.f32 %v1390, %v1214
    %v1397 = vmul.f32 %v1390, %v1215
    %v1398 = vmul.f32 %v1390, %v1216
    %v1399 = vstv %s1389
    %v1400 = vmul.f32 %v1399, %v1380
    %v1401 = vmul.f32 %v1399, %v1381
    %v1402 = vmul.f32 %v1399, %v1382
    %v1403 = vmul.f32 %v1399, %v1383
    %v1404 = vmul.f32 %v1399, %v1384
    %v1405 = vmul.f32 %v1399, %v1385
    %v1406 = vmul.f32 %v1399, %v1386
    %v1407 = vmul.f32 %v1399, %v1387
    %v1408 = vadd.f32 %v1391, %v1400
    %v1409 = vadd.f32 %v1392, %v1401
    %v1410 = vadd.f32 %v1393, %v1402
    %v1411 = vadd.f32 %v1394, %v1403
    %v1412 = vadd.f32 %v1395, %v1404
    %v1413 = vadd.f32 %v1396, %v1405
    %v1414 = vadd.f32 %v1397, %v1406
    %v1415 = vadd.f32 %v1398, %v1407
    %v1416 = vld [vmem:[%s5] sm:$0xff]
    %v1417 = vld [vmem:[%s5 + $0x8] sm:$0xff]
    %v1418 = vld [vmem:[%s5 + $0x10] sm:$0xff]
    %v1419 = vld [vmem:[%s5 + $0x18] sm:$0xff]
    %v1420 = vld [vmem:[%s5 + $0x20] sm:$0xff]
    %v1421 = vld [vmem:[%s5 + $0x28] sm:$0xff]
    %v1422 = vld [vmem:[%s5 + $0x30] sm:$0xff]
    %v1423 = vld [vmem:[%s5 + $0x38] sm:$0xff]
    %v1424 = vld [vmem:[%s5 + $0x40] sm:$0xff]
    %v1425 = vld [vmem:[%s5 + $0x48] sm:$0xff]
    %v1426 = vld [vmem:[%s5 + $0x50] sm:$0xff]
    %v1427 = vld [vmem:[%s5 + $0x58] sm:$0xff]
    %v1428 = vld [vmem:[%s5 + $0x60] sm:$0xff]
    %v1429 = vld [vmem:[%s5 + $0x68] sm:$0xff]
    %v1430 = vld [vmem:[%s5 + $0x70] sm:$0xff]
    %v1431 = vld [vmem:[%s5 + $0x78] sm:$0xff]
    %v1432 = vld [vmem:[%s5 + $0x80] sm:$0xff]
    %v1433 = vld [vmem:[%s5 + $0x88] sm:$0xff]
    %v1434 = vld [vmem:[%s5 + $0x90] sm:$0xff]
    %v1435 = vld [vmem:[%s5 + $0x98] sm:$0xff]
    %v1436 = vld [vmem:[%s5 + $0xa0] sm:$0xff]
    %v1437 = vld [vmem:[%s5 + $0xa8] sm:$0xff]
    %v1438 = vld [vmem:[%s5 + $0xb0] sm:$0xff]
    %v1439 = vld [vmem:[%s5 + $0xb8] sm:$0xff]
    %v1440 = vld [vmem:[%s5 + $0xc0] sm:$0xff]
    %v1441 = vld [vmem:[%s5 + $0xc8] sm:$0xff]
    %v1442 = vld [vmem:[%s5 + $0xd0] sm:$0xff]
    %v1443 = vld [vmem:[%s5 + $0xd8] sm:$0xff]
    %v1444 = vld [vmem:[%s5 + $0xe0] sm:$0xff]
    %v1445 = vld [vmem:[%s5 + $0xe8] sm:$0xff]
    %v1446 = vld [vmem:[%s5 + $0xf0] sm:$0xff]
    %v1447 = vld [vmem:[%s5 + $0xf8] sm:$0xff]
    %v1448 = vld [vmem:[%s5 + $0x100] sm:$0xff]
    %v1449 = vld [vmem:[%s5 + $0x108] sm:$0xff]
    %v1450 = vld [vmem:[%s5 + $0x110] sm:$0xff]
    %v1451 = vld [vmem:[%s5 + $0x118] sm:$0xff]
    %v1452 = vld [vmem:[%s5 + $0x120] sm:$0xff]
    %v1453 = vld [vmem:[%s5 + $0x128] sm:$0xff]
    %v1454 = vld [vmem:[%s5 + $0x130] sm:$0xff]
    %v1455 = vld [vmem:[%s5 + $0x138] sm:$0xff]
    %v1456 = vld [vmem:[%s5 + $0x140] sm:$0xff]
    %v1457 = vld [vmem:[%s5 + $0x148] sm:$0xff]
    %v1458 = vld [vmem:[%s5 + $0x150] sm:$0xff]
    %v1459 = vld [vmem:[%s5 + $0x158] sm:$0xff]
    %v1460 = vld [vmem:[%s5 + $0x160] sm:$0xff]
    %v1461 = vld [vmem:[%s5 + $0x168] sm:$0xff]
    %v1462 = vld [vmem:[%s5 + $0x170] sm:$0xff]
    %v1463 = vld [vmem:[%s5 + $0x178] sm:$0xff]
    %v1464 = vld [vmem:[%s5 + $0x180] sm:$0xff]
    %v1465 = vld [vmem:[%s5 + $0x188] sm:$0xff]
    %v1466 = vld [vmem:[%s5 + $0x190] sm:$0xff]
    %v1467 = vld [vmem:[%s5 + $0x198] sm:$0xff]
    %v1468 = vld [vmem:[%s5 + $0x1a0] sm:$0xff]
    %v1469 = vld [vmem:[%s5 + $0x1a8] sm:$0xff]
    %v1470 = vld [vmem:[%s5 + $0x1b0] sm:$0xff]
    %v1471 = vld [vmem:[%s5 + $0x1b8] sm:$0xff]
    %v1472 = vld [vmem:[%s5 + $0x1c0] sm:$0xff]
    %v1473 = vld [vmem:[%s5 + $0x1c8] sm:$0xff]
    %v1474 = vld [vmem:[%s5 + $0x1d0] sm:$0xff]
    %v1475 = vld [vmem:[%s5 + $0x1d8] sm:$0xff]
    %v1476 = vld [vmem:[%s5 + $0x1e0] sm:$0xff]
    %v1477 = vld [vmem:[%s5 + $0x1e8] sm:$0xff]
    %v1478 = vld [vmem:[%s5 + $0x1f0] sm:$0xff]
    %v1479 = vld [vmem:[%s5 + $0x1f8] sm:$0xff]
    %1480 = vmatprep.subr.mxu0 0.0
    %1481 = vmatpush1.msra.mxu0 %v1416
    %1482 = vmatprep.subr.mxu0 0.0
    %1483 = vmatpush1.msra.mxu0 %v1417
    %1484 = vmatprep.subr.mxu0 0.0
    %1485 = vmatpush1.msra.mxu0 %v1418
    %1486 = vmatprep.subr.mxu0 0.0
    %1487 = vmatpush1.msra.mxu0 %v1419
    %1488 = vmatprep.subr.mxu0 0.0
    %1489 = vmatpush1.msra.mxu0 %v1420
    %1490 = vmatprep.subr.mxu0 0.0
    %1491 = vmatpush1.msra.mxu0 %v1421
    %1492 = vmatprep.subr.mxu0 0.0
    %1493 = vmatpush1.msra.mxu0 %v1422
    %1494 = vmatprep.subr.mxu0 0.0
    %1495 = vmatpush1.msra.mxu0 %v1423
    %1496 = vmatprep.subr.mxu0 0.0
    %1497 = vmatpush1.msra.mxu0 %v1424
    %1498 = vmatprep.subr.mxu0 0.0
    %1499 = vmatpush1.msra.mxu0 %v1425
    %1500 = vmatprep.subr.mxu0 0.0
    %1501 = vmatpush1.msra.mxu0 %v1426
    %1502 = vmatprep.subr.mxu0 0.0
    %1503 = vmatpush1.msra.mxu0 %v1427
    %1504 = vmatprep.subr.mxu0 0.0
    %1505 = vmatpush1.msra.mxu0 %v1428
    %1506 = vmatprep.subr.mxu0 0.0
    %1507 = vmatpush1.msra.mxu0 %v1429
    %1508 = vmatprep.subr.mxu0 0.0
    %1509 = vmatpush1.msra.mxu0 %v1430
    %1510 = vmatprep.subr.mxu0 0.0
    %1511 = vmatpush1.msra.mxu0 %v1431
    %1512 = vmatprep.subr.mxu0 0.0
    %1513 = vmatpush1.msra.mxu0 %v1432
    %1514 = vmatprep.subr.mxu0 0.0
    %1515 = vmatpush1.msra.mxu0 %v1433
    %1516 = vmatprep.subr.mxu0 0.0
    %1517 = vmatpush1.msra.mxu0 %v1434
    %1518 = vmatprep.subr.mxu0 0.0
    %1519 = vmatpush1.msra.mxu0 %v1435
    %1520 = vmatprep.subr.mxu0 0.0
    %1521 = vmatpush1.msra.mxu0 %v1436
    %1522 = vmatprep.subr.mxu0 0.0
    %1523 = vmatpush1.msra.mxu0 %v1437
    %1524 = vmatprep.subr.mxu0 0.0
    %1525 = vmatpush1.msra.mxu0 %v1438
    %1526 = vmatprep.subr.mxu0 0.0
    %1527 = vmatpush1.msra.mxu0 %v1439
    %1528 = vmatprep.subr.mxu0 0.0
    %1529 = vmatpush1.msra.mxu0 %v1440
    %1530 = vmatprep.subr.mxu0 0.0
    %1531 = vmatpush1.msra.mxu0 %v1441
    %1532 = vmatprep.subr.mxu0 0.0
    %1533 = vmatpush1.msra.mxu0 %v1442
    %1534 = vmatprep.subr.mxu0 0.0
    %1535 = vmatpush1.msra.mxu0 %v1443
    %1536 = vmatprep.subr.mxu0 0.0
    %1537 = vmatpush1.msra.mxu0 %v1444
    %1538 = vmatprep.subr.mxu0 0.0
    %1539 = vmatpush1.msra.mxu0 %v1445
    %1540 = vmatprep.subr.mxu0 0.0
    %1541 = vmatpush1.msra.mxu0 %v1446
    %1542 = vmatprep.subr.mxu0 0.0
    %1543 = vmatpush1.msra.mxu0 %v1447
    %1544 = vmatprep.mubr.f32.mxu0 %v1409
    %1545 = vmatmul.mubr.f32.gmra.mrb[0].mxu0 %v1408
    %v1546 = vpop.f32.mrb[0].mxu0
    %v1547 = vadd.f32 0.0, %v1546
    %v1548 = vpop.f32.mrb[0].mxu0
    %1549 = vmatprep.mubr.f32.mxu0 %v1413
    %1550 = vmatmul.mubr.f32.gmra.mrb[0].mxu0 %v1412
    %v1551 = vpop.f32.mrb[0].mxu0
    %v1552 = vadd.f32 0.0, %v1551
    %v1553 = vpop.f32.mrb[0].mxu0
    %1554 = vdwg.mxu0
    %1555 = vmatprep.subr.mxu0 0.0
    %1556 = vmatpush1.msra.mxu0 %v1448
    %1557 = vmatprep.subr.mxu0 0.0
    %1558 = vmatpush1.msra.mxu0 %v1449
    %1559 = vmatprep.subr.mxu0 0.0
    %1560 = vmatpush1.msra.mxu0 %v1450
    %1561 = vmatprep.subr.mxu0 0.0
    %1562 = vmatpush1.msra.mxu0 %v1451
    %1563 = vmatprep.subr.mxu0 0.0
    %1564 = vmatpush1.msra.mxu0 %v1452
    %1565 = vmatprep.subr.mxu0 0.0
    %1566 = vmatpush1.msra.mxu0 %v1453
    %1567 = vmatprep.subr.mxu0 0.0
    %1568 = vmatpush1.msra.mxu0 %v1454
    %1569 = vmatprep.subr.mxu0 0.0
    %1570 = vmatpush1.msra.mxu0 %v1455
    %1571 = vmatprep.subr.mxu0 0.0
    %1572 = vmatpush1.msra.mxu0 %v1456
    %1573 = vmatprep.subr.mxu0 0.0
    %1574 = vmatpush1.msra.mxu0 %v1457
    %1575 = vmatprep.subr.mxu0 0.0
    %1576 = vmatpush1.msra.mxu0 %v1458
    %1577 = vmatprep.subr.mxu0 0.0
    %1578 = vmatpush1.msra.mxu0 %v1459
    %1579 = vmatprep.subr.mxu0 0.0
    %1580 = vmatpush1.msra.mxu0 %v1460
    %1581 = vmatprep.subr.mxu0 0.0
    %1582 = vmatpush1.msra.mxu0 %v1461
    %1583 = vmatprep.subr.mxu0 0.0
    %1584 = vmatpush1.msra.mxu0 %v1462
    %1585 = vmatprep.subr.mxu0 0.0
    %1586 = vmatpush1.msra.mxu0 %v1463
    %1587 = vmatprep.subr.mxu0 0.0
    %1588 = vmatpush1.msra.mxu0 %v1464
    %1589 = vmatprep.subr.mxu0 0.0
    %1590 = vmatpush1.msra.mxu0 %v1465
    %1591 = vmatprep.subr.mxu0 0.0
    %1592 = vmatpush1.msra.mxu0 %v1466
    %1593 = vmatprep.subr.mxu0 0.0
    %1594 = vmatpush1.msra.mxu0 %v1467
    %1595 = vmatprep.subr.mxu0 0.0
    %1596 = vmatpush1.msra.mxu0 %v1468
    %1597 = vmatprep.subr.mxu0 0.0
    %1598 = vmatpush1.msra.mxu0 %v1469
    %1599 = vmatprep.subr.mxu0 0.0
    %1600 = vmatpush1.msra.mxu0 %v1470
    %1601 = vmatprep.subr.mxu0 0.0
    %1602 = vmatpush1.msra.mxu0 %v1471
    %1603 = vmatprep.subr.mxu0 0.0
    %1604 = vmatpush1.msra.mxu0 %v1472
    %1605 = vmatprep.subr.mxu0 0.0
    %1606 = vmatpush1.msra.mxu0 %v1473
    %1607 = vmatprep.subr.mxu0 0.0
    %1608 = vmatpush1.msra.mxu0 %v1474
    %1609 = vmatprep.subr.mxu0 0.0
    %1610 = vmatpush1.msra.mxu0 %v1475
    %1611 = vmatprep.subr.mxu0 0.0
    %1612 = vmatpush1.msra.mxu0 %v1476
    %1613 = vmatprep.subr.mxu0 0.0
    %1614 = vmatpush1.msra.mxu0 %v1477
    %1615 = vmatprep.subr.mxu0 0.0
    %1616 = vmatpush1.msra.mxu0 %v1478
    %1617 = vmatprep.subr.mxu0 0.0
    %1618 = vmatpush1.msra.mxu0 %v1479
    %1619 = vmatprep.mubr.f32.mxu0 %v1411
    %1620 = vmatmul.mubr.f32.gmra.mrb[0].mxu0 %v1410
    %v1621 = vpop.f32.mrb[0].mxu0
    %v1622 = vadd.f32 %v1547, %v1621
    %v1623 = vpop.f32.mrb[0].mxu0
    %1624 = vmatprep.mubr.f32.mxu0 %v1415
    %1625 = vmatmul.mubr.f32.gmra.mrb[0].mxu0 %v1414
    %v1626 = vpop.f32.mrb[0].mxu0
    %v1627 = vadd.f32 %v1552, %v1626
    %v1628 = vpop.f32.mrb[0].mxu0
    %1629 = vdwg.mxu0
    %v1630 = vld [vmem:[%s4] sm:$0xff]
    %v1631 = vld [vmem:[%s4 + $0x8] sm:$0x3]
    %v1633 = vsel %vm224, %v1630, 0
    %v1636 = vsel %vm224, %v1631, 0
    %1638 = vmatprep.subr.mxu0 0.0
    %1639 = vmatpush1.msra.mxu0 %v1622
    %1640 = vmatprep.subr.mxu0 0.0
    %1641 = vmatpush1.msra.mxu0 %v1627
    %1642 = vmatprep.subr.mxu0 0.0
    %1643 = vmatpush1.msra.mxu0 0.0
    %1644 = vmatprep.subr.mxu0 0.0
    %1645 = vmatpush1.msra.mxu0 0.0
    %1646 = vmatprep.subr.mxu0 0.0
    %1647 = vmatpush1.msra.mxu0 0.0
    %1648 = vmatprep.subr.mxu0 0.0
    %1649 = vmatpush1.msra.mxu0 0.0
    %1650 = vmatprep.subr.mxu0 0.0
    %1651 = vmatpush1.msra.mxu0 0.0
    %1652 = vmatprep.subr.mxu0 0.0
    %1653 = vmatpush1.msra.mxu0 0.0
    %1654 = vmatprep.subr.mxu0 0.0
    %1655 = vmatpush1.msra.mxu0 0.0
    %1656 = vmatprep.subr.mxu0 0.0
    %1657 = vmatpush1.msra.mxu0 0.0
    %1658 = vmatprep.subr.mxu0 0.0
    %1659 = vmatpush1.msra.mxu0 0.0
    %1660 = vmatprep.subr.mxu0 0.0
    %1661 = vmatpush1.msra.mxu0 0.0
    %1662 = vmatprep.subr.mxu0 0.0
    %1663 = vmatpush1.msra.mxu0 0.0
    %1664 = vmatprep.subr.mxu0 0.0
    %1665 = vmatpush1.msra.mxu0 0.0
    %1666 = vmatprep.subr.mxu0 0.0
    %1667 = vmatpush1.msra.mxu0 0.0
    %1668 = vmatprep.subr.mxu0 0.0
    %1669 = vmatpush1.msra.mxu0 0.0
    %1670 = vmatprep.subr.mxu0 0.0
    %1671 = vmatpush1.msra.mxu0 0.0
    %1672 = vmatprep.subr.mxu0 0.0
    %1673 = vmatpush1.msra.mxu0 0.0
    %1674 = vmatprep.subr.mxu0 0.0
    %1675 = vmatpush1.msra.mxu0 0.0
    %1676 = vmatprep.subr.mxu0 0.0
    %1677 = vmatpush1.msra.mxu0 0.0
    %1678 = vmatprep.subr.mxu0 0.0
    %1679 = vmatpush1.msra.mxu0 0.0
    %1680 = vmatprep.subr.mxu0 0.0
    %1681 = vmatpush1.msra.mxu0 0.0
    %1682 = vmatprep.subr.mxu0 0.0
    %1683 = vmatpush1.msra.mxu0 0.0
    %1684 = vmatprep.subr.mxu0 0.0
    %1685 = vmatpush1.msra.mxu0 0.0
    %1686 = vmatprep.subr.mxu0 0.0
    %1687 = vmatpush1.msra.mxu0 0.0
    %1688 = vmatprep.subr.mxu0 0.0
    %1689 = vmatpush1.msra.mxu0 0.0
    %1690 = vmatprep.subr.mxu0 0.0
    %1691 = vmatpush1.msra.mxu0 0.0
    %1692 = vmatprep.subr.mxu0 0.0
    %1693 = vmatpush1.msra.mxu0 0.0
    %1694 = vmatprep.subr.mxu0 0.0
    %1695 = vmatpush1.msra.mxu0 0.0
    %1696 = vmatprep.subr.mxu0 0.0
    %1697 = vmatpush1.msra.mxu0 0.0
    %1698 = vmatprep.subr.mxu0 0.0
    %1699 = vmatpush1.msra.mxu0 0.0
    %1700 = vmatprep.subr.mxu0 0.0
    %1701 = vmatpush1.msra.mxu0 0.0
    %1702 = vmatprep.mubr.f32.mxu0 0.0
    %1703 = vmatmul.mubr.f32.gmra.mrb[0].mxu0 %v1633
    %v1704 = vpop.f32.mrb[0].mxu0
    %v1705 = vadd.f32 0.0, %v1704
    %v1706 = vpop.f32.mrb[0].mxu0
    %1707 = vmatprep.mubr.f32.mxu0 0.0
    %1708 = vmatmul.mubr.f32.gmra.mrb[0].mxu0 %v1636
    %v1709 = vpop.f32.mrb[0].mxu0
    %v1710 = vadd.f32 0.0, %v1709
    %v1711 = vpop.f32.mrb[0].mxu0
    %1712 = vdwg.mxu0
    %vm1713 = vcmask 15360
    %1714 = vst.msk [vmem:[%s6] sm:$0xff] %vm1713, %v1705
    %vm1715 = vcmask 9216
    %1716 = vst.msk [vmem:[%s6 + $0x8] sm:$0x3] %vm1715, %v1710
    // Predicated region
    $region30: #{darts_controller_forward.1} parent=1 // pred_check
      _
    $region31: #{darts_controller_forward.1} parent=1 // pred_check_branch
      %1718 = sbr.rel (0) target = $region33
    $region32: #{darts_controller_forward.1} parent=1 // pred_region
      _
    $region33: #{darts_controller_forward.1} parent=1 // pred_fallthru
      _
    // Predicated region
    $region34: #{darts_controller_forward.1} parent=1 // pred_check
      _
    $region35: #{darts_controller_forward.1} parent=1 // pred_check_branch
      %1720 = sbr.rel (0) target = $region37
    $region36: #{darts_controller_forward.1} parent=1 // pred_region
      _
    $region37: #{darts_controller_forward.1} parent=1 // pred_fallthru
      _
    %1721 = vsyncpa [#allocation3], 1

</llo_original>
